<compile_context>
chip_gen: v7x
topology: tpu7x:2x2x1
jax: 0.10.0
libtpu: 0.0.40
codegen_flags: <defaults>
</compile_context>

<pallas_src>
from functools import partial

import jax
import jax.numpy as jnp
from jax.experimental import pallas as pl
from jax.experimental.pallas import tpu as pltpu

EPS = 1e-5
LANE = 128


# ----------------------------------------------------------------------------- helpers


def _round_up(v, m):
    return (v + m - 1) // m * m


def _pad_last(a, target):
    pad = target - a.shape[-1]
    if pad == 0:
        return a
    cfg = [(0, 0)] * (a.ndim - 1) + [(0, pad)]
    return jnp.pad(a, cfg)


def _pad_vec2d(v, target, fill=0.0):
    """(C,) -> (1, target) with zero/`fill` padding (lane-dense per-channel param)."""
    pad = target - v.shape[0]
    if pad != 0:
        v = jnp.pad(v, (0, pad), constant_values=fill)
    return v.reshape(1, target)


def _pack_taps(w, cin_p, cout_p):
    """(3, Cin, Cout) tap weights -> (3, cin_p, cout_p), zero padded.
    Tap 0 multiplies x[l-1] (as in PyTorch Conv1d, padding=1)."""
    k, cin, cout = w.shape
    return jnp.zeros((k, cin_p, cout_p), w.dtype).at[:, :cin, :cout].set(w)


def _pad_mat(w, cin_p, cout_p):
    cin, cout = w.shape
    return jnp.zeros((cin_p, cout_p), w.dtype).at[:cin, :cout].set(w)


def _tpu_caps():
    """(vmem_capacity_bytes, tensorcores_per_chip) with safe fallbacks."""
    vmem = 128 << 20
    cores = 1
    try:
        info = pltpu.get_tpu_info()
        vmem = int(getattr(info, "vmem_capacity_bytes", vmem) or vmem)
        for name in ("num_cores", "core_count", "tensorcores_per_chip", "num_tensorcores"):
            v = getattr(info, name, None)
            if v:
                cores = int(v)
                break
    except Exception:  # not on TPU / field names unavailable -> conservative defaults
        pass
    return vmem, cores


# ----------------------------------------------------------------------- in-kernel math


def _conv3(a, w_ref, is_first, is_last):
    """3-tap conv (k=3, stride=1, pad=1) over rows flattened as (sample, l).

    a: (R, C) f32, rows never split a sample; w_ref: Ref (3, C, Cout).
    Shifted copies come from pltpu.roll (XLU slot); the (R, 1) masks supply the
    per-sample zero padding.  Three per-tap MXU matmuls accumulate in f32 (no im2col
    concatenate temporary -> lower VMEM, no vst-heavy copy)."""
    R = a.shape[0]
    prev = jnp.where(is_first, 0.0, pltpu.roll(a, shift=1, axis=0))        # a[l-1]
    nxt = jnp.where(is_last, 0.0, pltpu.roll(a, shift=R - 1, axis=0))      # a[l+1]
    acc = jnp.dot(a, w_ref[1], preferred_element_type=jnp.float32)
    acc = acc + jnp.dot(prev, w_ref[0], preferred_element_type=jnp.float32)
    acc = acc + jnp.dot(nxt, w_ref[2], preferred_element_type=jnp.float32)
    return acc


def _boundary_masks(R, L):
    pos = jax.lax.broadcasted_iota(jnp.int32, (R, 1), 0) % L
    return pos == 0, pos == (L - 1)


def _bn_train(y, gamma, beta, relu):
    """Training-mode BatchNorm over all rows of y (single pass: sum & sumsq),
    per-channel affine (and optional ReLU) fused into one y*scale+shift sweep."""
    inv_n = 1.0 / y.shape[0]
    s = jnp.sum(y, axis=0, keepdims=True)
    s2 = jnp.sum(y * y, axis=0, keepdims=True)
    mean = s * inv_n
    var = jnp.maximum(s2 * inv_n - mean * mean, 0.0)   # f32 accums; guard cancellation
    scale = gamma * jax.lax.rsqrt(var + EPS)
    shift = beta - mean * scale
    out = y * scale + shift
    return jnp.maximum(out, 0.0) if relu else out


def _stats2(y):
    """Per-channel partial BN stats for one tile: rows [sum, sumsq] -> (2, C)."""
    s = jnp.sum(y, axis=0, keepdims=True)
    s2 = jnp.sum(y * y, axis=0, keepdims=True)
    return jnp.concatenate([s, s2], axis=0)


def _finalize_bn(st, gamma, beta, count):
    """Reduce per-tile partial stats (nt, 2, C) to fused affine (scale, shift), each (1, C)."""
    s = jnp.sum(st[:, 0, :], axis=0, keepdims=True)
    s2 = jnp.sum(st[:, 1, :], axis=0, keepdims=True)
    mean = s / count
    var = jnp.maximum(s2 / count - mean * mean, 0.0)
    scale = gamma * jax.lax.rsqrt(var + EPS)
    shift = beta - mean * scale
    return scale, shift


# ------------------------------------------------------------------------------ kernels


def _k_fused(x_ref, w1_ref, b1_ref, g1_ref, be1_ref,
             w2_ref, g2_ref, be2_ref, wd_ref, gd_ref, bed_ref, o_ref, *, L):
    """Whole block in one VMEM-resident invocation (working set fits VMEM)."""
    x = x_ref[...]                                              # (R, Cin_p) f32
    is_first, is_last = _boundary_masks(x.shape[0], L)          # masks shared by both convs
    y1 = _conv3(x, w1_ref, is_first, is_last) + b1_ref[...]
    a1 = _bn_train(y1, g1_ref[...], be1_ref[...], relu=True)    # bn1 + relu fused
    y2 = _conv3(a1, w2_ref, is_first, is_last)
    main = _bn_train(y2, g2_ref[...], be2_ref[...], relu=False)
    yd = jnp.dot(x, wd_ref[...], preferred_element_type=jnp.float32)   # 1x1 conv
    idn = _bn_train(yd, gd_ref[...], bed_ref[...], relu=False)
    o_ref[...] = jnp.maximum(main + idn, 0.0)


def _k_conv1(x_ref, w1_ref, b1_ref, wd_ref, y1_ref, st1_ref, std_ref, *, L):
    """Tiled pass 1: conv1(+bias); partial BN stats for y1 and for the (not stored)
    downsample branch.  y1 cast to the intermediate dtype only on store."""
    x = x_ref[...]                                              # (TR, Cin_p) f32
    is_first, is_last = _boundary_masks(x.shape[0], L)
    y1 = _conv3(x, w1_ref, is_first, is_last) + b1_ref[...]
    yd = jnp.dot(x, wd_ref[...], preferred_element_type=jnp.float32)
    st1_ref[0] = _stats2(y1)
    std_ref[0] = _stats2(yd)                                    # yd itself never hits HBM
    y1_ref[...] = y1.astype(y1_ref.dtype)


def _k_conv2(y1_ref, sc1_ref, sh1_ref, w2_ref, y2_ref, st2_ref, *, L):
    """Tiled pass 2: fused bn1+relu (global stats), conv2; partial BN stats."""
    a = jnp.maximum(y1_ref[...].astype(jnp.float32) * sc1_ref[...] + sh1_ref[...], 0.0)
    is_first, is_last = _boundary_masks(a.shape[0], L)
    y2 = _conv3(a, w2_ref, is_first, is_last)
    st2_ref[0] = _stats2(y2)
    y2_ref[...] = y2.astype(y2_ref.dtype)


def _k_final(x_ref, y2_ref, wd_ref, sc2_ref, sh2_ref, scd_ref, shd_ref, o_ref):
    """Tiled pass 3: recompute the 1x1 downsample from x (MXU has slack; saves one full
    activation write + read), fused bn2 + bn_d + residual add + relu."""
    yd = jnp.dot(x_ref[...], wd_ref[...], preferred_element_type=jnp.float32)
    m = y2_ref[...].astype(jnp.float32) * sc2_ref[...] + sh2_ref[...]
    idn = yd * scd_ref[...] + shd_ref[...]
    o_ref[...] = jnp.maximum(m + idn, 0.0)


# ----------------------------------------------------------------------------- wrappers


def _fused_call(x, w1, b1, g1, be1, w2, g2, be2, wd, gd, bed, L, cout_p, vmem_limit):
    R = x.shape[0]
    vmem = pl.BlockSpec(memory_space=pltpu.MemorySpace.VMEM)
    return pl.pallas_call(
        partial(_k_fused, L=L),
        out_shape=jax.ShapeDtypeStruct((R, cout_p), jnp.float32),
        in_specs=[vmem] * 11,
        out_specs=vmem,
        compiler_params=pltpu.CompilerParams(vmem_limit_bytes=vmem_limit),
    )(x, w1, b1, g1, be1, w2, g2, be2, wd, gd, bed)


def _pick_rows_per_tile(N, L, cap_rows, align, n_cores):
    """Largest whole-sample row tile <= cap_rows with `align`-aligned rows.
    Prefers tile counts divisible by the TensorCore count (megacore balance)."""
    cands = [d for d in range(1, N + 1)
             if N % d == 0 and d * L <= cap_rows and (d * L) % align == 0]
    if not cands:
        # TODO(synk): awkward (N, L) -> L-tiling with a 1-row halo; fall back to one tile.
        return N * L
    if n_cores > 1:
        balanced = [d for d in cands if (N // d) % n_cores == 0]
        if balanced:
            return max(balanced) * L
    return max(cands) * L


def _tiled_call(x, w1, b1, g1, be1, w2, g2, be2, wd, gd, bed,
                N, L, cout_p, rows_per_tile, act_dtype, vmem_limit, n_cores):
    R, cin_p = x.shape
    TR = rows_per_tile
    nt = R // TR
    grid = (nt,)
    cparams = pltpu.CompilerParams(dimension_semantics=("parallel",),
                                   vmem_limit_bytes=vmem_limit)

    def rows(c):
        return pl.BlockSpec((TR, c), lambda i: (i, 0))

    def full(a):
        nd = a.ndim
        return pl.BlockSpec(a.shape, lambda i, _nd=nd: (0,) * _nd)

    st_spec = pl.BlockSpec((1, 2, cout_p), lambda i: (i, 0, 0))
    st_shape = jax.ShapeDtypeStruct((nt, 2, cout_p), jnp.float32)
    act_shape = jax.ShapeDtypeStruct((R, cout_p), act_dtype)
    out_shape = jax.ShapeDtypeStruct((R, cout_p), jnp.float32)

    # Pass 1: conv1(+bias) + partial stats for bn1 and bn_d (downsample stays in VMEM).
    y1, st1, std = pl.pallas_call(
        partial(_k_conv1, L=L),
        grid=grid,
        out_shape=(act_shape, st_shape, st_shape),
        in_specs=[rows(cin_p), full(w1), full(b1), full(wd)],
        out_specs=(rows(cout_p), st_spec, st_spec),
        compiler_params=cparams,
    )(x, w1, b1, wd)

    cnt = float(R)                                   # BN stats over the FULL (N, L) extent
    sc1, sh1 = _finalize_bn(st1, g1, be1, cnt)
    scd, shd = _finalize_bn(std, gd, bed, cnt)

    # Pass 2: fused bn1+relu (global stats), conv2; partial stats for bn2.
    y2, st2 = pl.pallas_call(
        partial(_k_conv2, L=L),
        grid=grid,
        out_shape=(act_shape, st_shape),
        in_specs=[rows(cout_p), full(sc1), full(sh1), full(w2)],
        out_specs=(rows(cout_p), st_spec),
        compiler_params=cparams,
    )(y1, sc1, sh1, w2)

    sc2, sh2 = _finalize_bn(st2, g2, be2, cnt)

    # Pass 3: recompute downsample matmul, fused bn2 + bn_d + residual add + relu.
    return pl.pallas_call(
        _k_final,
        grid=grid,
        out_shape=out_shape,
        in_specs=[rows(cin_p), rows(cout_p), full(wd), full(sc2), full(sh2),
                  full(scd), full(shd)],
        out_specs=rows(cout_p),
        compiler_params=cparams,
    )(x, y2, wd, sc2, sh2, scd, shd)


def basic_block_pallas(x_nlc, params, *, tiled=None, max_rows_per_tile=None,
                       intermediate_dtype=jnp.bfloat16):
    """BasicBlock forward.

    x_nlc: (N, L, Cin) float32 -- channels LAST (lane axis).  Keep the surrounding model
    channels-last end-to-end to avoid NCL<->NLC transpose round-trips.
    `intermediate_dtype` controls only the tiled path's HBM intermediates (y1/y2);
    all matmuls, BN stats, and affine math stay f32.  Returns (N, L, Cout) float32.
    """
    N, L, Cin = x_nlc.shape
    Cout = params["w1"].shape[2]
    cin_p = _round_up(Cin, LANE)
    cout_p = _round_up(Cout, LANE)
    R = N * L

    # Lane-dense packing: zero-pad channels to a multiple of 128 (zero weight/bias rows
    # keep the math exact; padded output channels are sliced off below) and flatten rows.
    x = _pad_last(x_nlc, cin_p).reshape(R, cin_p)
    w1 = _pack_taps(params["w1"], cin_p, cout_p)
    w2 = _pack_taps(params["w2"], cout_p, cout_p)
    wd = _pad_mat(params["wd"], cin_p, cout_p)
    b1 = _pad_vec2d(params["b1"], cout_p)
    g1 = _pad_vec2d(params["g1"], cout_p, 1.0)
    be1 = _pad_vec2d(params["be1"], cout_p)
    g2 = _pad_vec2d(params["g2"], cout_p, 1.0)
    be2 = _pad_vec2d(params["be2"], cout_p)
    gd = _pad_vec2d(params["gd"], cout_p, 1.0)
    bed = _pad_vec2d(params["bed"], cout_p)

    # Generation-aware budgets (128 MiB VMEM on v5e/v6e, 64 MiB on v7x).
    vmem_cap, n_cores = _tpu_caps()
    fused_budget = int(0.70 * vmem_cap)          # ~90 MiB on v5e/v6e, ~45 MiB on v7x
    vmem_limit = int(0.75 * vmem_cap)            # scoped compiler limit for our calls
    if max_rows_per_tile is None:
        max_rows_per_tile = 4096 if vmem_cap >= (96 << 20) else 2048

    # Rough f32 live-set estimate for the fused kernel (per-tap shift temporaries + acts).
    est_bytes = 4 * R * (3 * cin_p + 6 * cout_p)
    if tiled is None:
        if n_cores >= 2 and N >= 2:
            tiled = True                          # keep every TensorCore busy (v7x)
        else:
            tiled = est_bytes > fused_budget

    if tiled:
        act_dtype = jnp.dtype(intermediate_dtype)
        align = 16 if act_dtype == jnp.dtype(jnp.bfloat16) else 8
        TR = _pick_rows_per_tile(N, L, max_rows_per_tile, align, n_cores)
        out = _tiled_call(x, w1, b1, g1, be1, w2, g2, be2, wd, gd, bed,
                          N, L, cout_p, TR, act_dtype, vmem_limit, n_cores)
    else:
        out = _fused_call(x, w1, b1, g1, be1, w2, g2, be2, wd, gd, bed,
                          L, cout_p, vmem_limit)

    return out.reshape(N, L, cout_p)[:, :, :Cout]


# ---------------------------------------------------------------------------- reference


def basic_block_ref(x_nlc, params):
    """Pure-JAX reference (same math, plain jnp), channels-last (N, L, C)."""
    x = x_nlc

    def conv3(a, w):
        zm = jnp.pad(a, ((0, 0), (1, 0), (0, 0)))[:, :-1, :]
        zp = jnp.pad(a, ((0, 0), (0, 1), (0, 0)))[:, 1:, :]
        return (jnp.einsum("nlc,co->nlo", zm, w[0]) +
                jnp.einsum("nlc,co->nlo", a, w[1]) +
                jnp.einsum("nlc,co->nlo", zp, w[2]))

    def bn(a, g, b):
        m = jnp.mean(a, axis=(0, 1), keepdims=True)
        v = jnp.mean((a - m) ** 2, axis=(0, 1), keepdims=True)
        return (a - m) / jnp.sqrt(v + EPS) * g + b

    out = conv3(x, params["w1"]) + params["b1"]
    out = jax.nn.relu(bn(out, params["g1"], params["be1"]))
    out = bn(conv3(out, params["w2"]), params["g2"], params["be2"])
    ident = bn(jnp.einsum("nlc,co->nlo", x, params["wd"]), params["gd"], params["bed"])
    return jax.nn.relu(out + ident)


def init_params(key, in_dim, out_dim):
    ks = jax.random.split(key, 8)
    return {
        # conv weights stored as (kernel_tap, Cin, Cout); tap 0 multiplies x[l-1]
        "w1": jax.random.normal(ks[0], (3, in_dim, out_dim), jnp.float32) * 0.2,
        "b1": jax.random.normal(ks[1], (out_dim,), jnp.float32) * 0.1,
        "w2": jax.random.normal(ks[2], (3, out_dim, out_dim), jnp.float32) * 0.2,
        "wd": jax.random.normal(ks[3], (in_dim, out_dim), jnp.float32) * 0.2,
        "g1": 1.0 + 0.1 * jax.random.normal(ks[4], (out_dim,), jnp.float32),
        "be1": 0.1 * jax.random.normal(ks[5], (out_dim,), jnp.float32),
        "g2": 1.0 + 0.1 * jax.random.normal(ks[6], (out_dim,), jnp.float32),
        "be2": 0.1 * jax.random.normal(ks[7], (out_dim,), jnp.float32),
        "gd": jnp.ones((out_dim,), jnp.float32),
        "bed": jnp.zeros((out_dim,), jnp.float32),
    }


if __name__ == "__main__":
    N, Cin, Cout, L = 2, 4, 8, 16
    key = jax.random.PRNGKey(0)
    kx, kp = jax.random.split(key)
    x = jax.random.normal(kx, (N, L, Cin), jnp.float32)      # channels-last (N, L, C)
    params = init_params(kp, Cin, Cout)

    ref = jax.block_until_ready(basic_block_ref(x, params))

    # Auto-selected path (fused on 1-TC chips, tiled on multi-TC chips).
    out_auto = jax.block_until_ready(basic_block_pallas(x, params))
    # Fused single-call VMEM-resident path (all-f32, exact).
    out_fused = jax.block_until_ready(basic_block_pallas(x, params, tiled=False))
    # Tiled 3-pass path, f32 intermediates (exact); small tile cap forces a 2-tile grid
    # to exercise the partial-stats reduction and the "parallel" grid axis.
    out_tiled_f32 = jax.block_until_ready(
        basic_block_pallas(x, params, tiled=True, max_rows_per_tile=16,
                           intermediate_dtype=jnp.float32))
    # Tiled path with the default bf16 HBM intermediates (stats/affine stay f32).
    out_tiled_bf16 = jax.block_until_ready(
        basic_block_pallas(x, params, tiled=True, max_rows_per_tile=16))

    assert out_auto.shape == (N, L, Cout)
    assert out_fused.shape == (N, L, Cout)
    assert out_tiled_f32.shape == (N, L, Cout)
    assert out_tiled_bf16.shape == (N, L, Cout)
    assert jnp.allclose(out_fused, ref, atol=1e-3, rtol=1e-3)
    assert jnp.allclose(out_tiled_f32, ref, atol=1e-3, rtol=1e-3)
    assert jnp.allclose(out_tiled_bf16, ref, atol=2e-2, rtol=2e-2)   # bf16 intermediates
    assert jnp.allclose(out_auto, ref, atol=2e-2, rtol=2e-2)
    print("KERNEL_OK")
</pallas_src>

<mosaic_0001>
module attributes {stable_mosaic.version = 11 : i64} {
  func.func @_k_fused(%arg0: memref<32x128xf32, #tpu.memory_space<vmem>>, %arg1: memref<3x128x128xf32, #tpu.memory_space<vmem>>, %arg2: memref<1x128xf32, #tpu.memory_space<vmem>>, %arg3: memref<1x128xf32, #tpu.memory_space<vmem>>, %arg4: memref<1x128xf32, #tpu.memory_space<vmem>>, %arg5: memref<3x128x128xf32, #tpu.memory_space<vmem>>, %arg6: memref<1x128xf32, #tpu.memory_space<vmem>>, %arg7: memref<1x128xf32, #tpu.memory_space<vmem>>, %arg8: memref<128x128xf32, #tpu.memory_space<vmem>>, %arg9: memref<1x128xf32, #tpu.memory_space<vmem>>, %arg10: memref<1x128xf32, #tpu.memory_space<vmem>>, %arg11: memref<32x128xf32, #tpu.memory_space<vmem>>) attributes {dimension_semantics = [], scalar_prefetch = 0 : i64, scratch_operands = 0 : i64, tpu.core_type = #tpu.core_type<tc>} {
    %c0 = arith.constant 0 : index
    %c0_0 = arith.constant 0 : index
    %0 = vector.load %arg0[%c0, %c0_0] : memref<32x128xf32, #tpu.memory_space<vmem>>, vector<32x128xf32>
    %1 = tpu.iota {dimensions = array<i32: 0>} : vector<32x1xi32>
    %c16_i32 = arith.constant 16 : i32
    %c0_i32 = arith.constant 0 : i32
    %2 = arith.cmpi eq, %c16_i32, %c0_i32 : i32
    %c1_i32 = arith.constant 1 : i32
    %3 = arith.select %2, %c1_i32, %c16_i32 : i32
    %4 = vector.broadcast %3 : i32 to vector<32x1xi32>
    %5 = arith.remsi %1, %4 : vector<32x1xi32>
    %c0_i32_1 = arith.constant 0 : i32
    %6 = vector.broadcast %c0_i32_1 : i32 to vector<32x1xi32>
    %7 = arith.cmpi ne, %5, %6 : vector<32x1xi32>
    %c0_i32_2 = arith.constant 0 : i32
    %8 = vector.broadcast %c0_i32_2 : i32 to vector<32x1xi32>
    %9 = arith.cmpi slt, %5, %8 : vector<32x1xi32>
    %c0_i32_3 = arith.constant 0 : i32
    %10 = arith.cmpi slt, %3, %c0_i32_3 : i32
    %11 = vector.broadcast %10 : i1 to vector<32x1xi1>
    %12 = vector.broadcast %11 : vector<32x1xi1> to vector<32x1xi1>
    %13 = arith.xori %9, %12 : vector<32x1xi1>
    %14 = arith.andi %13, %7 : vector<32x1xi1>
    %15 = vector.broadcast %3 : i32 to vector<32x1xi32>
    %16 = arith.addi %5, %15 : vector<32x1xi32>
    %17 = arith.select %14, %16, %5 : vector<32x1xi1>, vector<32x1xi32>
    %c0_i32_4 = arith.constant 0 : i32
    %18 = vector.broadcast %c0_i32_4 : i32 to vector<32x1xi32>
    %19 = arith.cmpi eq, %17, %18 : vector<32x1xi32>
    %c15_i32 = arith.constant 15 : i32
    %20 = vector.broadcast %c15_i32 : i32 to vector<32x1xi32>
    %21 = arith.cmpi eq, %17, %20 : vector<32x1xi32>
    %c1_i32_5 = arith.constant 1 : i32
    %22 = tpu.dynamic_rotate %0 by %c1_i32_5 dim 0 : vector<32x128xf32>, i32 -> vector<32x128xf32>
    %cst = arith.constant 0.000000e+00 : f32
    %23 = vector.shape_cast %19 : vector<32x1xi1> to vector<32x1xi1>
    %24 = vector.broadcast %23 : vector<32x1xi1> to vector<32x128xi1>
    %25 = vector.broadcast %cst : f32 to vector<32x128xf32>
    %26 = arith.select %24, %25, %22 : vector<32x128xi1>, vector<32x128xf32>
    %c31_i32 = arith.constant 31 : i32
    %27 = tpu.dynamic_rotate %0 by %c31_i32 dim 0 : vector<32x128xf32>, i32 -> vector<32x128xf32>
    %cst_6 = arith.constant 0.000000e+00 : f32
    %28 = vector.shape_cast %21 : vector<32x1xi1> to vector<32x1xi1>
    %29 = vector.broadcast %28 : vector<32x1xi1> to vector<32x128xi1>
    %30 = vector.broadcast %cst_6 : f32 to vector<32x128xf32>
    %31 = arith.select %29, %30, %27 : vector<32x128xi1>, vector<32x128xf32>
    %c1 = arith.constant 1 : index
    %c0_7 = arith.constant 0 : index
    %c0_8 = arith.constant 0 : index
    %32 = vector.load %arg1[%c1, %c0_7, %c0_8] : memref<3x128x128xf32, #tpu.memory_space<vmem>>, vector<1x128x128xf32>
    %33 = vector.shape_cast %32 : vector<1x128x128xf32> to vector<128x128xf32>
    %cst_9 = arith.constant dense<0.000000e+00> : vector<32x128xf32>
    %34 = tpu.matmul %0, %33, %cst_9 {dimension_numbers = #tpu.dot_dimension_numbers<[1], [0], [0], [1], [0, 0, 1, 1], [], []>} : vector<32x128xf32>, vector<128x128xf32>, vector<32x128xf32> -> vector<32x128xf32>
    %c0_10 = arith.constant 0 : index
    %c0_11 = arith.constant 0 : index
    %c0_12 = arith.constant 0 : index
    %35 = vector.load %arg1[%c0_10, %c0_11, %c0_12] : memref<3x128x128xf32, #tpu.memory_space<vmem>>, vector<1x128x128xf32>
    %36 = vector.shape_cast %35 : vector<1x128x128xf32> to vector<128x128xf32>
    %cst_13 = arith.constant dense<0.000000e+00> : vector<32x128xf32>
    %37 = tpu.matmul %26, %36, %cst_13 {dimension_numbers = #tpu.dot_dimension_numbers<[1], [0], [0], [1], [0, 0, 1, 1], [], []>} : vector<32x128xf32>, vector<128x128xf32>, vector<32x128xf32> -> vector<32x128xf32>
    %38 = arith.addf %34, %37 : vector<32x128xf32>
    %c2 = arith.constant 2 : index
    %c0_14 = arith.constant 0 : index
    %c0_15 = arith.constant 0 : index
    %39 = vector.load %arg1[%c2, %c0_14, %c0_15] : memref<3x128x128xf32, #tpu.memory_space<vmem>>, vector<1x128x128xf32>
    %40 = vector.shape_cast %39 : vector<1x128x128xf32> to vector<128x128xf32>
    %cst_16 = arith.constant dense<0.000000e+00> : vector<32x128xf32>
    %41 = tpu.matmul %31, %40, %cst_16 {dimension_numbers = #tpu.dot_dimension_numbers<[1], [0], [0], [1], [0, 0, 1, 1], [], []>} : vector<32x128xf32>, vector<128x128xf32>, vector<32x128xf32> -> vector<32x128xf32>
    %42 = arith.addf %38, %41 : vector<32x128xf32>
    %c0_17 = arith.constant 0 : index
    %c0_18 = arith.constant 0 : index
    %43 = vector.load %arg2[%c0_17, %c0_18] : memref<1x128xf32, #tpu.memory_space<vmem>>, vector<1x128xf32>
    %44 = vector.broadcast %43 : vector<1x128xf32> to vector<32x128xf32>
    %45 = arith.addf %42, %44 : vector<32x128xf32>
    %c0_19 = arith.constant 0 : index
    %c0_20 = arith.constant 0 : index
    %46 = vector.load %arg3[%c0_19, %c0_20] : memref<1x128xf32, #tpu.memory_space<vmem>>, vector<1x128xf32>
    %c0_21 = arith.constant 0 : index
    %c0_22 = arith.constant 0 : index
    %47 = vector.load %arg4[%c0_21, %c0_22] : memref<1x128xf32, #tpu.memory_space<vmem>>, vector<1x128xf32>
    %cst_23 = arith.constant dense<0.000000e+00> : vector<128xf32>
    %48 = vector.multi_reduction <add>, %45, %cst_23 [0] : vector<32x128xf32> to vector<128xf32>
    %49 = vector.shape_cast %48 : vector<128xf32> to vector<1x128xf32>
    %50 = arith.mulf %45, %45 : vector<32x128xf32>
    %cst_24 = arith.constant dense<0.000000e+00> : vector<128xf32>
    %51 = vector.multi_reduction <add>, %50, %cst_24 [0] : vector<32x128xf32> to vector<128xf32>
    %52 = vector.shape_cast %51 : vector<128xf32> to vector<1x128xf32>
    %cst_25 = arith.constant 3.125000e-02 : f32
    %53 = vector.broadcast %cst_25 : f32 to vector<1x128xf32>
    %54 = arith.mulf %49, %53 : vector<1x128xf32>
    %cst_26 = arith.constant 3.125000e-02 : f32
    %55 = vector.broadcast %cst_26 : f32 to vector<1x128xf32>
    %56 = arith.mulf %52, %55 : vector<1x128xf32>
    %57 = arith.mulf %54, %54 : vector<1x128xf32>
    %58 = arith.subf %56, %57 : vector<1x128xf32>
    %cst_27 = arith.constant 0.000000e+00 : f32
    %59 = vector.broadcast %cst_27 : f32 to vector<1x128xf32>
    %60 = arith.maximumf %58, %59 : vector<1x128xf32>
    %cst_28 = arith.constant 9.99999974E-6 : f32
    %61 = vector.broadcast %cst_28 : f32 to vector<1x128xf32>
    %62 = arith.addf %60, %61 : vector<1x128xf32>
    %63 = math.rsqrt %62 : vector<1x128xf32>
    %64 = arith.mulf %46, %63 : vector<1x128xf32>
    %65 = arith.mulf %54, %64 : vector<1x128xf32>
    %66 = arith.subf %47, %65 : vector<1x128xf32>
    %67 = vector.broadcast %64 : vector<1x128xf32> to vector<32x128xf32>
    %68 = arith.mulf %45, %67 : vector<32x128xf32>
    %69 = vector.broadcast %66 : vector<1x128xf32> to vector<32x128xf32>
    %70 = arith.addf %68, %69 : vector<32x128xf32>
    %cst_29 = arith.constant 0.000000e+00 : f32
    %71 = vector.broadcast %cst_29 : f32 to vector<32x128xf32>
    %72 = arith.maximumf %70, %71 : vector<32x128xf32>
    %c1_i32_30 = arith.constant 1 : i32
    %73 = tpu.dynamic_rotate %72 by %c1_i32_30 dim 0 : vector<32x128xf32>, i32 -> vector<32x128xf32>
    %cst_31 = arith.constant 0.000000e+00 : f32
    %74 = vector.shape_cast %19 : vector<32x1xi1> to vector<32x1xi1>
    %75 = vector.broadcast %74 : vector<32x1xi1> to vector<32x128xi1>
    %76 = vector.broadcast %cst_31 : f32 to vector<32x128xf32>
    %77 = arith.select %75, %76, %73 : vector<32x128xi1>, vector<32x128xf32>
    %c31_i32_32 = arith.constant 31 : i32
    %78 = tpu.dynamic_rotate %72 by %c31_i32_32 dim 0 : vector<32x128xf32>, i32 -> vector<32x128xf32>
    %cst_33 = arith.constant 0.000000e+00 : f32
    %79 = vector.shape_cast %21 : vector<32x1xi1> to vector<32x1xi1>
    %80 = vector.broadcast %79 : vector<32x1xi1> to vector<32x128xi1>
    %81 = vector.broadcast %cst_33 : f32 to vector<32x128xf32>
    %82 = arith.select %80, %81, %78 : vector<32x128xi1>, vector<32x128xf32>
    %c1_34 = arith.constant 1 : index
    %c0_35 = arith.constant 0 : index
    %c0_36 = arith.constant 0 : index
    %83 = vector.load %arg5[%c1_34, %c0_35, %c0_36] : memref<3x128x128xf32, #tpu.memory_space<vmem>>, vector<1x128x128xf32>
    %84 = vector.shape_cast %83 : vector<1x128x128xf32> to vector<128x128xf32>
    %cst_37 = arith.constant dense<0.000000e+00> : vector<32x128xf32>
    %85 = tpu.matmul %72, %84, %cst_37 {dimension_numbers = #tpu.dot_dimension_numbers<[1], [0], [0], [1], [0, 0, 1, 1], [], []>} : vector<32x128xf32>, vector<128x128xf32>, vector<32x128xf32> -> vector<32x128xf32>
    %c0_38 = arith.constant 0 : index
    %c0_39 = arith.constant 0 : index
    %c0_40 = arith.constant 0 : index
    %86 = vector.load %arg5[%c0_38, %c0_39, %c0_40] : memref<3x128x128xf32, #tpu.memory_space<vmem>>, vector<1x128x128xf32>
    %87 = vector.shape_cast %86 : vector<1x128x128xf32> to vector<128x128xf32>
    %cst_41 = arith.constant dense<0.000000e+00> : vector<32x128xf32>
    %88 = tpu.matmul %77, %87, %cst_41 {dimension_numbers = #tpu.dot_dimension_numbers<[1], [0], [0], [1], [0, 0, 1, 1], [], []>} : vector<32x128xf32>, vector<128x128xf32>, vector<32x128xf32> -> vector<32x128xf32>
    %89 = arith.addf %85, %88 : vector<32x128xf32>
    %c2_42 = arith.constant 2 : index
    %c0_43 = arith.constant 0 : index
    %c0_44 = arith.constant 0 : index
    %90 = vector.load %arg5[%c2_42, %c0_43, %c0_44] : memref<3x128x128xf32, #tpu.memory_space<vmem>>, vector<1x128x128xf32>
    %91 = vector.shape_cast %90 : vector<1x128x128xf32> to vector<128x128xf32>
    %cst_45 = arith.constant dense<0.000000e+00> : vector<32x128xf32>
    %92 = tpu.matmul %82, %91, %cst_45 {dimension_numbers = #tpu.dot_dimension_numbers<[1], [0], [0], [1], [0, 0, 1, 1], [], []>} : vector<32x128xf32>, vector<128x128xf32>, vector<32x128xf32> -> vector<32x128xf32>
    %93 = arith.addf %89, %92 : vector<32x128xf32>
    %c0_46 = arith.constant 0 : index
    %c0_47 = arith.constant 0 : index
    %94 = vector.load %arg6[%c0_46, %c0_47] : memref<1x128xf32, #tpu.memory_space<vmem>>, vector<1x128xf32>
    %c0_48 = arith.constant 0 : index
    %c0_49 = arith.constant 0 : index
    %95 = vector.load %arg7[%c0_48, %c0_49] : memref<1x128xf32, #tpu.memory_space<vmem>>, vector<1x128xf32>
    %cst_50 = arith.constant dense<0.000000e+00> : vector<128xf32>
    %96 = vector.multi_reduction <add>, %93, %cst_50 [0] : vector<32x128xf32> to vector<128xf32>
    %97 = vector.shape_cast %96 : vector<128xf32> to vector<1x128xf32>
    %98 = arith.mulf %93, %93 : vector<32x128xf32>
    %cst_51 = arith.constant dense<0.000000e+00> : vector<128xf32>
    %99 = vector.multi_reduction <add>, %98, %cst_51 [0] : vector<32x128xf32> to vector<128xf32>
    %100 = vector.shape_cast %99 : vector<128xf32> to vector<1x128xf32>
    %cst_52 = arith.constant 3.125000e-02 : f32
    %101 = vector.broadcast %cst_52 : f32 to vector<1x128xf32>
    %102 = arith.mulf %97, %101 : vector<1x128xf32>
    %cst_53 = arith.constant 3.125000e-02 : f32
    %103 = vector.broadcast %cst_53 : f32 to vector<1x128xf32>
    %104 = arith.mulf %100, %103 : vector<1x128xf32>
    %105 = arith.mulf %102, %102 : vector<1x128xf32>
    %106 = arith.subf %104, %105 : vector<1x128xf32>
    %cst_54 = arith.constant 0.000000e+00 : f32
    %107 = vector.broadcast %cst_54 : f32 to vector<1x128xf32>
    %108 = arith.maximumf %106, %107 : vector<1x128xf32>
    %cst_55 = arith.constant 9.99999974E-6 : f32
    %109 = vector.broadcast %cst_55 : f32 to vector<1x128xf32>
    %110 = arith.addf %108, %109 : vector<1x128xf32>
    %111 = math.rsqrt %110 : vector<1x128xf32>
    %112 = arith.mulf %94, %111 : vector<1x128xf32>
    %113 = arith.mulf %102, %112 : vector<1x128xf32>
    %114 = arith.subf %95, %113 : vector<1x128xf32>
    %115 = vector.broadcast %112 : vector<1x128xf32> to vector<32x128xf32>
    %116 = arith.mulf %93, %115 : vector<32x128xf32>
    %117 = vector.broadcast %114 : vector<1x128xf32> to vector<32x128xf32>
    %118 = arith.addf %116, %117 : vector<32x128xf32>
    %c0_56 = arith.constant 0 : index
    %c0_57 = arith.constant 0 : index
    %119 = vector.load %arg8[%c0_56, %c0_57] : memref<128x128xf32, #tpu.memory_space<vmem>>, vector<128x128xf32>
    %cst_58 = arith.constant dense<0.000000e+00> : vector<32x128xf32>
    %120 = tpu.matmul %0, %119, %cst_58 {dimension_numbers = #tpu.dot_dimension_numbers<[1], [0], [0], [1], [0, 0, 1, 1], [], []>} : vector<32x128xf32>, vector<128x128xf32>, vector<32x128xf32> -> vector<32x128xf32>
    %c0_59 = arith.constant 0 : index
    %c0_60 = arith.constant 0 : index
    %121 = vector.load %arg9[%c0_59, %c0_60] : memref<1x128xf32, #tpu.memory_space<vmem>>, vector<1x128xf32>
    %c0_61 = arith.constant 0 : index
    %c0_62 = arith.constant 0 : index
    %122 = vector.load %arg10[%c0_61, %c0_62] : memref<1x128xf32, #tpu.memory_space<vmem>>, vector<1x128xf32>
    %cst_63 = arith.constant dense<0.000000e+00> : vector<128xf32>
    %123 = vector.multi_reduction <add>, %120, %cst_63 [0] : vector<32x128xf32> to vector<128xf32>
    %124 = vector.shape_cast %123 : vector<128xf32> to vector<1x128xf32>
    %125 = arith.mulf %120, %120 : vector<32x128xf32>
    %cst_64 = arith.constant dense<0.000000e+00> : vector<128xf32>
    %126 = vector.multi_reduction <add>, %125, %cst_64 [0] : vector<32x128xf32> to vector<128xf32>
    %127 = vector.shape_cast %126 : vector<128xf32> to vector<1x128xf32>
    %cst_65 = arith.constant 3.125000e-02 : f32
    %128 = vector.broadcast %cst_65 : f32 to vector<1x128xf32>
    %129 = arith.mulf %124, %128 : vector<1x128xf32>
    %cst_66 = arith.constant 3.125000e-02 : f32
    %130 = vector.broadcast %cst_66 : f32 to vector<1x128xf32>
    %131 = arith.mulf %127, %130 : vector<1x128xf32>
    %132 = arith.mulf %129, %129 : vector<1x128xf32>
    %133 = arith.subf %131, %132 : vector<1x128xf32>
    %cst_67 = arith.constant 0.000000e+00 : f32
    %134 = vector.broadcast %cst_67 : f32 to vector<1x128xf32>
    %135 = arith.maximumf %133, %134 : vector<1x128xf32>
    %cst_68 = arith.constant 9.99999974E-6 : f32
    %136 = vector.broadcast %cst_68 : f32 to vector<1x128xf32>
    %137 = arith.addf %135, %136 : vector<1x128xf32>
    %138 = math.rsqrt %137 : vector<1x128xf32>
    %139 = arith.mulf %121, %138 : vector<1x128xf32>
    %140 = arith.mulf %129, %139 : vector<1x128xf32>
    %141 = arith.subf %122, %140 : vector<1x128xf32>
    %142 = vector.broadcast %139 : vector<1x128xf32> to vector<32x128xf32>
    %143 = arith.mulf %120, %142 : vector<32x128xf32>
    %144 = vector.broadcast %141 : vector<1x128xf32> to vector<32x128xf32>
    %145 = arith.addf %143, %144 : vector<32x128xf32>
    %146 = arith.addf %118, %145 : vector<32x128xf32>
    %cst_69 = arith.constant 0.000000e+00 : f32
    %147 = vector.broadcast %cst_69 : f32 to vector<32x128xf32>
    %148 = arith.maximumf %146, %147 : vector<32x128xf32>
    %c0_70 = arith.constant 0 : index
    %c0_71 = arith.constant 0 : index
    %149 = vector.load %arg11[%c0_70, %c0_71] : memref<32x128xf32, #tpu.memory_space<vmem>>, vector<32x128xf32>
    tpu.vector_store %arg11[%c0_70, %c0_71], %148 {strides = array<i32>} : memref<32x128xf32, #tpu.memory_space<vmem>>, vector<32x128xf32>,
    return
  }
}

</mosaic_0001>

<llo_original>
// kernel: tpu_custom_call.1
$region0: #{tpu_custom_call.1}
  #allocation0 [shape = 'u32[]', space=smem, size = 0x4, offset = 0x4, fixed_abs, tag = 'smem constant byte address 0x4 - core index']
  #allocation1 [shape = 'u32[144,128]{1,0:T(1,128)}', space=vmem, size = 0x12000, scoped, tag = 'internal scratch']
  %s0 = inlined_call_operand.hbm [shape: f32[32,128], index: 0, kind: input, shape index: {}]
  %s1 = inlined_call_operand.hbm [shape: f32[3,128,128], index: 1, kind: input, shape index: {}]
  %s2 = inlined_call_operand.hbm [shape: f32[1,128], index: 2, kind: input, shape index: {}]
  %s3 = inlined_call_operand.hbm [shape: f32[1,128], index: 3, kind: input, shape index: {}]
  %s4 = inlined_call_operand.hbm [shape: f32[1,128], index: 4, kind: input, shape index: {}]
  %s5 = inlined_call_operand.hbm [shape: f32[3,128,128], index: 5, kind: input, shape index: {}]
  %s6 = inlined_call_operand.hbm [shape: f32[1,128], index: 6, kind: input, shape index: {}]
  %s7 = inlined_call_operand.hbm [shape: f32[1,128], index: 7, kind: input, shape index: {}]
  %s8 = inlined_call_operand.hbm [shape: f32[128,128], index: 8, kind: input, shape index: {}]
  %s9 = inlined_call_operand.hbm [shape: f32[1,128], index: 9, kind: input, shape index: {}]
  %s10 = inlined_call_operand.hbm [shape: f32[1,128], index: 10, kind: input, shape index: {}]
  %s11 = inlined_call_operand.hbm [shape: f32[32,128], index: 11, kind: output, shape index: {}]
  %s12 = sld [smem:[#allocation0]]
  $region98: #{tpu_custom_call.1} parent=0
    _
  %s14 = ssub.s32 1, %s12
  %s15 = scalar_select 0, %s14, %s12
  $region1: #{tpu_custom_call.1} parent=0
    #allocation2 [shape = 'u8[16384]{0}', space=vmem, size = 0x4000, scoped, tag = 'input window, operand 0, single buffered']
    #allocation3 [shape = 's32[1]{0}', space=sflag, size = 0x4, scoped, tag = 'scoped memory for tpu_custom_call.1']
    #allocation4 [shape = 's32[1]{0}', space=sflag, size = 0x4, scoped, tag = 'scoped memory for tpu_custom_call.1']
    #allocation5 [shape = 'u8[196608]{0}', space=vmem, size = 0x30000, scoped, tag = 'input window, operand 1, single buffered']
    #allocation6 [shape = 's32[1]{0}', space=sflag, size = 0x4, scoped, tag = 'scoped memory for tpu_custom_call.1']
    #allocation7 [shape = 'u8[512]{0}', space=vmem, size = 0x400, scoped, tag = 'input window, operand 2, single buffered']
    #allocation8 [shape = 'u8[512]{0}', space=vmem, size = 0x400, scoped, tag = 'input window, operand 3, single buffered']
    #allocation9 [shape = 's32[1]{0}', space=sflag, size = 0x4, scoped, tag = 'scoped memory for tpu_custom_call.1']
    #allocation10 [shape = 'u8[512]{0}', space=vmem, size = 0x400, scoped, tag = 'input window, operand 4, single buffered']
    #allocation11 [shape = 'u8[196608]{0}', space=vmem, size = 0x30000, scoped, tag = 'input window, operand 5, single buffered']
    #allocation12 [shape = 's32[1]{0}', space=sflag, size = 0x4, scoped, tag = 'scoped memory for tpu_custom_call.1']
    #allocation13 [shape = 'u8[512]{0}', space=vmem, size = 0x400, scoped, tag = 'input window, operand 6, single buffered']
    #allocation14 [shape = 'u8[512]{0}', space=vmem, size = 0x400, scoped, tag = 'input window, operand 7, single buffered']
    #allocation15 [shape = 's32[1]{0}', space=sflag, size = 0x4, scoped, tag = 'scoped memory for tpu_custom_call.1']
    #allocation16 [shape = 'u8[65536]{0}', space=vmem, size = 0x10000, scoped, tag = 'input window, operand 8, single buffered']
    #allocation17 [shape = 'u8[512]{0}', space=vmem, size = 0x400, scoped, tag = 'input window, operand 9, single buffered']
    #allocation18 [shape = 's32[1]{0}', space=sflag, size = 0x4, scoped, tag = 'scoped memory for tpu_custom_call.1']
    #allocation19 [shape = 'u8[512]{0}', space=vmem, size = 0x400, scoped, tag = 'input window, operand 10, single buffered']
    #allocation20 [shape = 'u8[16384]{0}', space=vmem, size = 0x4000, scoped, tag = 'output window, operand 0, single buffered']
    %16 = vsyncpa [#allocation3], 0
    %17 = vsyncpa [#allocation6], 0
    %18 = vsyncpa [#allocation9], 0
    %19 = vsyncpa [#allocation12], 0
    %20 = vsyncpa [#allocation15], 0
    %21 = vsyncpa [#allocation18], 0
    %22 = vsyncpa [#allocation4], 0
    // Predicated region
    $region2: #{tpu_custom_call.1} parent=1 // pred_check
      _
    $region3: #{tpu_custom_call.1} parent=1 // pred_check_branch
      %24 = sbr.rel (0) target = $region5
    $region4: #{tpu_custom_call.1} parent=1 // pred_region
      %s26 = ssub.s32 512, 512
      %27 = vsyncadd [#allocation3], %s26
      %s28 = sshll.u32 [#allocation2], 4
      %s29 = int_to_ptr.vmem [resolvable:$true] %s28
      %34 = dma.hbm_to_vmem [thread:$0]  %s0, 512, %s29, [#allocation3], 128, 128, 8
    $region5: #{tpu_custom_call.1} parent=1 // pred_fallthru
      _
    // Predicated region
    $region6: #{tpu_custom_call.1} parent=1 // pred_check
      _
    $region7: #{tpu_custom_call.1} parent=1 // pred_check_branch
      %36 = sbr.rel (0) target = $region9
    $region8: #{tpu_custom_call.1} parent=1 // pred_region
      %s38 = ssub.s32 6144, 6144
      %39 = vsyncadd [#allocation6], %s38
      %s40 = sshll.u32 [#allocation5], 4
      %s41 = int_to_ptr.vmem [resolvable:$true] %s40
      %46 = dma.hbm_to_vmem [thread:$0]  %s1, 6144, %s41, [#allocation6], 128, 128, 8
    $region9: #{tpu_custom_call.1} parent=1 // pred_fallthru
      _
    // Predicated region
    $region10: #{tpu_custom_call.1} parent=1 // pred_check
      _
    $region11: #{tpu_custom_call.1} parent=1 // pred_check_branch
      %48 = sbr.rel (0) target = $region13
    $region12: #{tpu_custom_call.1} parent=1 // pred_region
      %s50 = ssub.s32 16, 16
      %51 = vsyncadd [#allocation6], %s50
      %s53 = sshll.u32 [#allocation7], 4
      %s54 = int_to_ptr.vmem [resolvable:$true] %s53
      %56 = dma.hbm_to_vmem [thread:$0]  %s2, 16, %s54, [#allocation6]
    $region13: #{tpu_custom_call.1} parent=1 // pred_fallthru
      _
    // Predicated region
    $region14: #{tpu_custom_call.1} parent=1 // pred_check
      _
    $region15: #{tpu_custom_call.1} parent=1 // pred_check_branch
      %58 = sbr.rel (0) target = $region17
    $region16: #{tpu_custom_call.1} parent=1 // pred_region
      %s60 = ssub.s32 16, 16
      %61 = vsyncadd [#allocation9], %s60
      %s63 = sshll.u32 [#allocation8], 4
      %s64 = int_to_ptr.vmem [resolvable:$true] %s63
      %66 = dma.hbm_to_vmem [thread:$0]  %s3, 16, %s64, [#allocation9]
    $region17: #{tpu_custom_call.1} parent=1 // pred_fallthru
      _
    // Predicated region
    $region18: #{tpu_custom_call.1} parent=1 // pred_check
      _
    $region19: #{tpu_custom_call.1} parent=1 // pred_check_branch
      %68 = sbr.rel (0) target = $region21
    $region20: #{tpu_custom_call.1} parent=1 // pred_region
      %s70 = ssub.s32 16, 16
      %71 = vsyncadd [#allocation9], %s70
      %s73 = sshll.u32 [#allocation10], 4
      %s74 = int_to_ptr.vmem [resolvable:$true] %s73
      %76 = dma.hbm_to_vmem [thread:$0]  %s4, 16, %s74, [#allocation9]
    $region21: #{tpu_custom_call.1} parent=1 // pred_fallthru
      _
    // Predicated region
    $region22: #{tpu_custom_call.1} parent=1 // pred_check
      _
    $region23: #{tpu_custom_call.1} parent=1 // pred_check_branch
      %78 = sbr.rel (0) target = $region25
    $region24: #{tpu_custom_call.1} parent=1 // pred_region
      %s80 = ssub.s32 6144, 6144
      %81 = vsyncadd [#allocation12], %s80
      %s82 = sshll.u32 [#allocation11], 4
      %s83 = int_to_ptr.vmem [resolvable:$true] %s82
      %88 = dma.hbm_to_vmem [thread:$0]  %s5, 6144, %s83, [#allocation12], 128, 128, 8
    $region25: #{tpu_custom_call.1} parent=1 // pred_fallthru
      _
    // Predicated region
    $region26: #{tpu_custom_call.1} parent=1 // pred_check
      _
    $region27: #{tpu_custom_call.1} parent=1 // pred_check_branch
      %90 = sbr.rel (0) target = $region29
    $region28: #{tpu_custom_call.1} parent=1 // pred_region
      %s92 = ssub.s32 16, 16
      %93 = vsyncadd [#allocation12], %s92
      %s95 = sshll.u32 [#allocation13], 4
      %s96 = int_to_ptr.vmem [resolvable:$true] %s95
      %98 = dma.hbm_to_vmem [thread:$0]  %s6, 16, %s96, [#allocation12]
    $region29: #{tpu_custom_call.1} parent=1 // pred_fallthru
      _
    // Predicated region
    $region30: #{tpu_custom_call.1} parent=1 // pred_check
      _
    $region31: #{tpu_custom_call.1} parent=1 // pred_check_branch
      %100 = sbr.rel (0) target = $region33
    $region32: #{tpu_custom_call.1} parent=1 // pred_region
      %s102 = ssub.s32 16, 16
      %103 = vsyncadd [#allocation15], %s102
      %s105 = sshll.u32 [#allocation14], 4
      %s106 = int_to_ptr.vmem [resolvable:$true] %s105
      %108 = dma.hbm_to_vmem [thread:$0]  %s7, 16, %s106, [#allocation15]
    $region33: #{tpu_custom_call.1} parent=1 // pred_fallthru
      _
    // Predicated region
    $region34: #{tpu_custom_call.1} parent=1 // pred_check
      _
    $region35: #{tpu_custom_call.1} parent=1 // pred_check_branch
      %110 = sbr.rel (0) target = $region37
    $region36: #{tpu_custom_call.1} parent=1 // pred_region
      %s112 = ssub.s32 2048, 2048
      %113 = vsyncadd [#allocation15], %s112
      %s114 = sshll.u32 [#allocation16], 4
      %s115 = int_to_ptr.vmem [resolvable:$true] %s114
      %120 = dma.hbm_to_vmem [thread:$0]  %s8, 2048, %s115, [#allocation15], 128, 128, 8
    $region37: #{tpu_custom_call.1} parent=1 // pred_fallthru
      _
    // Predicated region
    $region38: #{tpu_custom_call.1} parent=1 // pred_check
      _
    $region39: #{tpu_custom_call.1} parent=1 // pred_check_branch
      %122 = sbr.rel (0) target = $region41
    $region40: #{tpu_custom_call.1} parent=1 // pred_region
      %s124 = ssub.s32 16, 16
      %125 = vsyncadd [#allocation18], %s124
      %s127 = sshll.u32 [#allocation17], 4
      %s128 = int_to_ptr.vmem [resolvable:$true] %s127
      %130 = dma.hbm_to_vmem [thread:$0]  %s9, 16, %s128, [#allocation18]
    $region41: #{tpu_custom_call.1} parent=1 // pred_fallthru
      _
    // Predicated region
    $region42: #{tpu_custom_call.1} parent=1 // pred_check
      _
    $region43: #{tpu_custom_call.1} parent=1 // pred_check_branch
      %132 = sbr.rel (0) target = $region45
    $region44: #{tpu_custom_call.1} parent=1 // pred_region
      %s134 = ssub.s32 16, 16
      %135 = vsyncadd [#allocation18], %s134
      %s137 = sshll.u32 [#allocation19], 4
      %s138 = int_to_ptr.vmem [resolvable:$true] %s137
      %140 = dma.hbm_to_vmem [thread:$0]  %s10, 16, %s138, [#allocation18]
    $region45: #{tpu_custom_call.1} parent=1 // pred_fallthru
      _
    // Predicated region
    $region46: #{tpu_custom_call.1} parent=1 // pred_check
      _
    $region47: #{tpu_custom_call.1} parent=1 // pred_check_branch
      %142 = sbr.rel (0) target = $region49
    $region48: #{tpu_custom_call.1} parent=1 // pred_region
      %143 = dma.done [#allocation3], 512
    $region49: #{tpu_custom_call.1} parent=1 // pred_fallthru
      _
    // Predicated region
    $region50: #{tpu_custom_call.1} parent=1 // pred_check
      _
    $region51: #{tpu_custom_call.1} parent=1 // pred_check_branch
      %145 = sbr.rel (0) target = $region53
    $region52: #{tpu_custom_call.1} parent=1 // pred_region
      %146 = dma.done [#allocation6], 6144
    $region53: #{tpu_custom_call.1} parent=1 // pred_fallthru
      _
    // Predicated region
    $region54: #{tpu_custom_call.1} parent=1 // pred_check
      _
    $region55: #{tpu_custom_call.1} parent=1 // pred_check_branch
      %148 = sbr.rel (0) target = $region57
    $region56: #{tpu_custom_call.1} parent=1 // pred_region
      %149 = dma.done [#allocation6], 16
    $region57: #{tpu_custom_call.1} parent=1 // pred_fallthru
      _
    // Predicated region
    $region58: #{tpu_custom_call.1} parent=1 // pred_check
      _
    $region59: #{tpu_custom_call.1} parent=1 // pred_check_branch
      %151 = sbr.rel (0) target = $region61
    $region60: #{tpu_custom_call.1} parent=1 // pred_region
      %152 = dma.done [#allocation9], 16
    $region61: #{tpu_custom_call.1} parent=1 // pred_fallthru
      _
    // Predicated region
    $region62: #{tpu_custom_call.1} parent=1 // pred_check
      _
    $region63: #{tpu_custom_call.1} parent=1 // pred_check_branch
      %154 = sbr.rel (0) target = $region65
    $region64: #{tpu_custom_call.1} parent=1 // pred_region
      %155 = dma.done [#allocation9], 16
    $region65: #{tpu_custom_call.1} parent=1 // pred_fallthru
      _
    // Predicated region
    $region66: #{tpu_custom_call.1} parent=1 // pred_check
      _
    $region67: #{tpu_custom_call.1} parent=1 // pred_check_branch
      %157 = sbr.rel (0) target = $region69
    $region68: #{tpu_custom_call.1} parent=1 // pred_region
      %158 = dma.done [#allocation12], 6144
    $region69: #{tpu_custom_call.1} parent=1 // pred_fallthru
      _
    // Predicated region
    $region70: #{tpu_custom_call.1} parent=1 // pred_check
      _
    $region71: #{tpu_custom_call.1} parent=1 // pred_check_branch
      %160 = sbr.rel (0) target = $region73
    $region72: #{tpu_custom_call.1} parent=1 // pred_region
      %161 = dma.done [#allocation12], 16
    $region73: #{tpu_custom_call.1} parent=1 // pred_fallthru
      _
    // Predicated region
    $region74: #{tpu_custom_call.1} parent=1 // pred_check
      _
    $region75: #{tpu_custom_call.1} parent=1 // pred_check_branch
      %163 = sbr.rel (0) target = $region77
    $region76: #{tpu_custom_call.1} parent=1 // pred_region
      %164 = dma.done [#allocation15], 16
    $region77: #{tpu_custom_call.1} parent=1 // pred_fallthru
      _
    // Predicated region
    $region78: #{tpu_custom_call.1} parent=1 // pred_check
      _
    $region79: #{tpu_custom_call.1} parent=1 // pred_check_branch
      %166 = sbr.rel (0) target = $region81
    $region80: #{tpu_custom_call.1} parent=1 // pred_region
      %167 = dma.done [#allocation15], 2048
    $region81: #{tpu_custom_call.1} parent=1 // pred_fallthru
      _
    // Predicated region
    $region82: #{tpu_custom_call.1} parent=1 // pred_check
      _
    $region83: #{tpu_custom_call.1} parent=1 // pred_check_branch
      %169 = sbr.rel (0) target = $region85
    $region84: #{tpu_custom_call.1} parent=1 // pred_region
      %170 = dma.done [#allocation18], 16
    $region85: #{tpu_custom_call.1} parent=1 // pred_fallthru
      _
    // Predicated region
    $region86: #{tpu_custom_call.1} parent=1 // pred_check
      _
    $region87: #{tpu_custom_call.1} parent=1 // pred_check_branch
      %172 = sbr.rel (0) target = $region89
    $region88: #{tpu_custom_call.1} parent=1 // pred_region
      %173 = dma.done [#allocation18], 16
    $region89: #{tpu_custom_call.1} parent=1 // pred_fallthru
      _
    %v174 = vld [vmem:[#allocation2] sm:$0xff]
    %v175 = vld [vmem:[#allocation2 + $0x8] sm:$0xff]
    %v176 = vld [vmem:[#allocation2 + $0x10] sm:$0xff]
    %v177 = vld [vmem:[#allocation2 + $0x18] sm:$0xff]
    %v178 = vlaneseq
    %v179 = vshrl.u32 %v178, 7
    %v180 = vadd.s32 %v179, 8
    %v181 = vadd.s32 %v179, 16
    %v182 = vadd.s32 %v179, 24
    %vm183 = vcmp.lt.s32.totalorder %v179, 0
    %v184 = vsub.s32 0, %v179
    %v185 = vsel %vm183, %v184, %v179
    %v186 = vshrl.u32 %v185, 4
    %v187 = vand.u32 %v185, 15
    %v188 = vsub.s32 0, %v187
    %v189 = vsel %vm183, %v188, %v187
    %vm190 = vcmp.lt.s32.totalorder %v180, 0
    %v191 = vsub.s32 0, %v180
    %v192 = vsel %vm190, %v191, %v180
    %v193 = vshrl.u32 %v192, 4
    %v194 = vand.u32 %v192, 15
    %v195 = vsub.s32 0, %v194
    %v196 = vsel %vm190, %v195, %v194
    %vm197 = vcmp.lt.s32.totalorder %v181, 0
    %v198 = vsub.s32 0, %v181
    %v199 = vsel %vm197, %v198, %v181
    %v200 = vshrl.u32 %v199, 4
    %v201 = vand.u32 %v199, 15
    %v202 = vsub.s32 0, %v201
    %v203 = vsel %vm197, %v202, %v201
    %vm204 = vcmp.lt.s32.totalorder %v182, 0
    %v205 = vsub.s32 0, %v182
    %v206 = vsel %vm204, %v205, %v182
    %v207 = vshrl.u32 %v206, 4
    %v208 = vand.u32 %v206, 15
    %v209 = vsub.s32 0, %v208
    %v210 = vsel %vm204, %v209, %v208
    %vm211 = vcmp.ne.s32.totalorder %v189, 0
    %vm212 = vcmp.ne.s32.totalorder %v196, 0
    %vm213 = vcmp.ne.s32.totalorder %v203, 0
    %vm214 = vcmp.ne.s32.totalorder %v210, 0
    %vm215 = vcmp.lt.s32.totalorder %v189, 0
    %vm216 = vcmp.lt.s32.totalorder %v196, 0
    %vm217 = vcmp.lt.s32.totalorder %v203, 0
    %vm218 = vcmp.lt.s32.totalorder %v210, 0
    %vm219 = vmand %vm215, %vm211
    %vm220 = vmand %vm216, %vm212
    %vm221 = vmand %vm217, %vm213
    %vm222 = vmand %vm218, %vm214
    %v223 = vadd.s32 %v189, 16
    %v224 = vadd.s32 %v196, 16
    %v225 = vadd.s32 %v203, 16
    %v226 = vadd.s32 %v210, 16
    %v227 = vsel %vm219, %v223, %v189
    %v228 = vsel %vm220, %v224, %v196
    %v229 = vsel %vm221, %v225, %v203
    %v230 = vsel %vm222, %v226, %v210
    %vm231 = vcmp.eq.s32.totalorder %v227, 0
    %vm232 = vcmp.eq.s32.totalorder %v228, 0
    %vm233 = vcmp.eq.s32.totalorder %v229, 0
    %vm234 = vcmp.eq.s32.totalorder %v230, 0
    %vm235 = vcmp.eq.s32.totalorder %v227, 15
    %vm236 = vcmp.eq.s32.totalorder %v228, 15
    %vm237 = vcmp.eq.s32.totalorder %v229, 15
    %vm238 = vcmp.eq.s32.totalorder %v230, 15
    %v239 = vrot.slane %v174, 7
    %v240 = vrot.slane %v175, 7
    %v241 = vrot.slane %v176, 7
    %v242 = vrot.slane %v177, 7
    %vm243 = vcmp.lt.s32.totalorder %v179, 1
    %v244 = vsel %vm243, %v241, %v242
    %v245 = vsel %vm243, %v240, %v241
    %v246 = vsel %vm243, %v239, %v240
    %v247 = vsel %vm243, %v242, %v239
    %v248 = vsel %vm231, 1, 0
    %v249 = vsel %vm232, 1, 0
    %v250 = vsel %vm233, 1, 0
    %v251 = vsel %vm234, 1, 0
    %vm252 = vcmp.eq.s32.totalorder %v248, 1
    %vm253 = vcmp.eq.s32.totalorder %v249, 1
    %vm254 = vcmp.eq.s32.totalorder %v250, 1
    %vm255 = vcmp.eq.s32.totalorder %v251, 1
    %v256 = vsel %vm252, 0.0, %v247
    %v257 = vsel %vm253, 0.0, %v246
    %v258 = vsel %vm254, 0.0, %v245
    %v259 = vsel %vm255, 0.0, %v244
    %v260 = vrot.slane %v174, 1
    %v261 = vrot.slane %v175, 1
    %v262 = vrot.slane %v176, 1
    %v263 = vrot.slane %v177, 1
    %vm264 = vcmp.lt.s32.totalorder %v179, 7
    %v265 = vsel %vm264, %v262, %v263
    %v266 = vsel %vm264, %v261, %v262
    %v267 = vsel %vm264, %v260, %v261
    %v268 = vsel %vm264, %v263, %v260
    %v269 = vsel %vm235, 1, 0
    %v270 = vsel %vm236, 1, 0
    %v271 = vsel %vm237, 1, 0
    %v272 = vsel %vm238, 1, 0
    %vm273 = vcmp.eq.s32.totalorder %v269, 1
    %vm274 = vcmp.eq.s32.totalorder %v270, 1
    %vm275 = vcmp.eq.s32.totalorder %v271, 1
    %vm276 = vcmp.eq.s32.totalorder %v272, 1
    %v277 = vsel %vm273, 0.0, %v267
    %v278 = vsel %vm274, 0.0, %v266
    %v279 = vsel %vm275, 0.0, %v265
    %v280 = vsel %vm276, 0.0, %v268
    %s281 = scalar_lea.vmem [#allocation5], 128
    %v282 = vld [vmem:[%s281] sm:$0xff]
    %v283 = vld [vmem:[%s281 + $0x8] sm:$0xff]
    %v284 = vld [vmem:[%s281 + $0x10] sm:$0xff]
    %v285 = vld [vmem:[%s281 + $0x18] sm:$0xff]
    %v286 = vld [vmem:[%s281 + $0x20] sm:$0xff]
    %v287 = vld [vmem:[%s281 + $0x28] sm:$0xff]
    %v288 = vld [vmem:[%s281 + $0x30] sm:$0xff]
    %v289 = vld [vmem:[%s281 + $0x38] sm:$0xff]
    %v290 = vld [vmem:[%s281 + $0x40] sm:$0xff]
    %v291 = vld [vmem:[%s281 + $0x48] sm:$0xff]
    %v292 = vld [vmem:[%s281 + $0x50] sm:$0xff]
    %v293 = vld [vmem:[%s281 + $0x58] sm:$0xff]
    %v294 = vld [vmem:[%s281 + $0x60] sm:$0xff]
    %v295 = vld [vmem:[%s281 + $0x68] sm:$0xff]
    %v296 = vld [vmem:[%s281 + $0x70] sm:$0xff]
    %v297 = vld [vmem:[%s281 + $0x78] sm:$0xff]
    %v298 = vld [vmem:[#allocation5] sm:$0xff]
    %v299 = vld [vmem:[#allocation5 + $0x8] sm:$0xff]
    %v300 = vld [vmem:[#allocation5 + $0x10] sm:$0xff]
    %v301 = vld [vmem:[#allocation5 + $0x18] sm:$0xff]
    %v302 = vld [vmem:[#allocation5 + $0x20] sm:$0xff]
    %v303 = vld [vmem:[#allocation5 + $0x28] sm:$0xff]
    %v304 = vld [vmem:[#allocation5 + $0x30] sm:$0xff]
    %v305 = vld [vmem:[#allocation5 + $0x38] sm:$0xff]
    %v306 = vld [vmem:[#allocation5 + $0x40] sm:$0xff]
    %v307 = vld [vmem:[#allocation5 + $0x48] sm:$0xff]
    %v308 = vld [vmem:[#allocation5 + $0x50] sm:$0xff]
    %v309 = vld [vmem:[#allocation5 + $0x58] sm:$0xff]
    %v310 = vld [vmem:[#allocation5 + $0x60] sm:$0xff]
    %v311 = vld [vmem:[#allocation5 + $0x68] sm:$0xff]
    %v312 = vld [vmem:[#allocation5 + $0x70] sm:$0xff]
    %v313 = vld [vmem:[#allocation5 + $0x78] sm:$0xff]
    %314 = vmatprep.subr.mxu0 0.0
    %315 = vmatpush1.msra.mxu0 %v298
    %316 = vmatprep.subr.mxu0 0.0
    %317 = vmatpush1.msra.mxu0 %v299
    %318 = vmatprep.subr.mxu0 0.0
    %319 = vmatpush1.msra.mxu0 %v300
    %320 = vmatprep.subr.mxu0 0.0
    %321 = vmatpush1.msra.mxu0 %v301
    %322 = vmatprep.subr.mxu0 0.0
    %323 = vmatpush1.msra.mxu0 %v302
    %324 = vmatprep.subr.mxu0 0.0
    %325 = vmatpush1.msra.mxu0 %v303
    %326 = vmatprep.subr.mxu0 0.0
    %327 = vmatpush1.msra.mxu0 %v304
    %328 = vmatprep.subr.mxu0 0.0
    %329 = vmatpush1.msra.mxu0 %v305
    %330 = vmatprep.subr.mxu0 0.0
    %331 = vmatpush1.msra.mxu0 %v306
    %332 = vmatprep.subr.mxu0 0.0
    %333 = vmatpush1.msra.mxu0 %v307
    %334 = vmatprep.subr.mxu0 0.0
    %335 = vmatpush1.msra.mxu0 %v308
    %336 = vmatprep.subr.mxu0 0.0
    %337 = vmatpush1.msra.mxu0 %v309
    %338 = vmatprep.subr.mxu0 0.0
    %339 = vmatpush1.msra.mxu0 %v310
    %340 = vmatprep.subr.mxu0 0.0
    %341 = vmatpush1.msra.mxu0 %v311
    %342 = vmatprep.subr.mxu0 0.0
    %343 = vmatpush1.msra.mxu0 %v312
    %344 = vmatprep.subr.mxu0 0.0
    %345 = vmatpush1.msra.mxu0 %v313
    %346 = vmatprep.subr.mxu0 0.0
    %347 = vmatpush1.msra.mxu0 0.0
    %348 = vmatprep.subr.mxu0 0.0
    %349 = vmatpush1.msra.mxu0 0.0
    %350 = vmatprep.subr.mxu0 0.0
    %351 = vmatpush1.msra.mxu0 0.0
    %352 = vmatprep.subr.mxu0 0.0
    %353 = vmatpush1.msra.mxu0 0.0
    %354 = vmatprep.subr.mxu0 0.0
    %355 = vmatpush1.msra.mxu0 0.0
    %356 = vmatprep.subr.mxu0 0.0
    %357 = vmatpush1.msra.mxu0 0.0
    %358 = vmatprep.subr.mxu0 0.0
    %359 = vmatpush1.msra.mxu0 0.0
    %360 = vmatprep.subr.mxu0 0.0
    %361 = vmatpush1.msra.mxu0 0.0
    %362 = vmatprep.subr.mxu0 0.0
    %363 = vmatpush1.msra.mxu0 0.0
    %364 = vmatprep.subr.mxu0 0.0
    %365 = vmatpush1.msra.mxu0 0.0
    %366 = vmatprep.subr.mxu0 0.0
    %367 = vmatpush1.msra.mxu0 0.0
    %368 = vmatprep.subr.mxu0 0.0
    %369 = vmatpush1.msra.mxu0 0.0
    %370 = vmatprep.subr.mxu0 0.0
    %371 = vmatpush1.msra.mxu0 0.0
    %372 = vmatprep.subr.mxu0 0.0
    %373 = vmatpush1.msra.mxu0 0.0
    %374 = vmatprep.subr.mxu0 0.0
    %375 = vmatpush1.msra.mxu0 0.0
    %376 = vmatprep.subr.mxu0 0.0
    %377 = vmatpush1.msra.mxu0 0.0
    %378 = vmatprep.mubr.f32.mxu0 0.0
    %379 = vmatmul.mubr.f32.gmra.mrb[0].mxu0 %v256
    %v380 = vpop.f32.mrb[0].mxu0
    %v381 = vadd.f32 0.0, %v380
    %v382 = vpop.f32.mrb[0].mxu0
    %383 = vmatprep.mubr.f32.mxu0 0.0
    %384 = vmatmul.mubr.f32.gmra.mrb[0].mxu0 %v257
    %v385 = vpop.f32.mrb[0].mxu0
    %v386 = vadd.f32 0.0, %v385
    %v387 = vpop.f32.mrb[0].mxu0
    %388 = vmatprep.mubr.f32.mxu0 0.0
    %389 = vmatmul.mubr.f32.gmra.mrb[0].mxu0 %v258
    %v390 = vpop.f32.mrb[0].mxu0
    %v391 = vadd.f32 0.0, %v390
    %v392 = vpop.f32.mrb[0].mxu0
    %393 = vmatprep.mubr.f32.mxu0 0.0
    %394 = vmatmul.mubr.f32.gmra.mrb[0].mxu0 %v259
    %v395 = vpop.f32.mrb[0].mxu0
    %v396 = vadd.f32 0.0, %v395
    %v397 = vpop.f32.mrb[0].mxu0
    %398 = vdwg.mxu0
    %399 = vmatprep.subr.mxu0 0.0
    %400 = vmatpush1.msra.mxu0 %v282
    %401 = vmatprep.subr.mxu0 0.0
    %402 = vmatpush1.msra.mxu0 %v283
    %403 = vmatprep.subr.mxu0 0.0
    %404 = vmatpush1.msra.mxu0 %v284
    %405 = vmatprep.subr.mxu0 0.0
    %406 = vmatpush1.msra.mxu0 %v285
    %407 = vmatprep.subr.mxu0 0.0
    %408 = vmatpush1.msra.mxu0 %v286
    %409 = vmatprep.subr.mxu0 0.0
    %410 = vmatpush1.msra.mxu0 %v287
    %411 = vmatprep.subr.mxu0 0.0
    %412 = vmatpush1.msra.mxu0 %v288
    %413 = vmatprep.subr.mxu0 0.0
    %414 = vmatpush1.msra.mxu0 %v289
    %415 = vmatprep.subr.mxu0 0.0
    %416 = vmatpush1.msra.mxu0 %v290
    %417 = vmatprep.subr.mxu0 0.0
    %418 = vmatpush1.msra.mxu0 %v291
    %419 = vmatprep.subr.mxu0 0.0
    %420 = vmatpush1.msra.mxu0 %v292
    %421 = vmatprep.subr.mxu0 0.0
    %422 = vmatpush1.msra.mxu0 %v293
    %423 = vmatprep.subr.mxu0 0.0
    %424 = vmatpush1.msra.mxu0 %v294
    %425 = vmatprep.subr.mxu0 0.0
    %426 = vmatpush1.msra.mxu0 %v295
    %427 = vmatprep.subr.mxu0 0.0
    %428 = vmatpush1.msra.mxu0 %v296
    %429 = vmatprep.subr.mxu0 0.0
    %430 = vmatpush1.msra.mxu0 %v297
    %431 = vmatprep.subr.mxu0 0.0
    %432 = vmatpush1.msra.mxu0 0.0
    %433 = vmatprep.subr.mxu0 0.0
    %434 = vmatpush1.msra.mxu0 0.0
    %435 = vmatprep.subr.mxu0 0.0
    %436 = vmatpush1.msra.mxu0 0.0
    %437 = vmatprep.subr.mxu0 0.0
    %438 = vmatpush1.msra.mxu0 0.0
    %439 = vmatprep.subr.mxu0 0.0
    %440 = vmatpush1.msra.mxu0 0.0
    %441 = vmatprep.subr.mxu0 0.0
    %442 = vmatpush1.msra.mxu0 0.0
    %443 = vmatprep.subr.mxu0 0.0
    %444 = vmatpush1.msra.mxu0 0.0
    %445 = vmatprep.subr.mxu0 0.0
    %446 = vmatpush1.msra.mxu0 0.0
    %447 = vmatprep.subr.mxu0 0.0
    %448 = vmatpush1.msra.mxu0 0.0
    %449 = vmatprep.subr.mxu0 0.0
    %450 = vmatpush1.msra.mxu0 0.0
    %451 = vmatprep.subr.mxu0 0.0
    %452 = vmatpush1.msra.mxu0 0.0
    %453 = vmatprep.subr.mxu0 0.0
    %454 = vmatpush1.msra.mxu0 0.0
    %455 = vmatprep.subr.mxu0 0.0
    %456 = vmatpush1.msra.mxu0 0.0
    %457 = vmatprep.subr.mxu0 0.0
    %458 = vmatpush1.msra.mxu0 0.0
    %459 = vmatprep.subr.mxu0 0.0
    %460 = vmatpush1.msra.mxu0 0.0
    %461 = vmatprep.subr.mxu0 0.0
    %462 = vmatpush1.msra.mxu0 0.0
    %463 = vmatprep.mubr.f32.mxu0 0.0
    %464 = vmatmul.mubr.f32.gmra.mrb[0].mxu0 %v174
    %v465 = vpop.f32.mrb[0].mxu0
    %v466 = vadd.f32 %v381, %v465
    %v467 = vpop.f32.mrb[0].mxu0
    %468 = vmatprep.mubr.f32.mxu0 0.0
    %469 = vmatmul.mubr.f32.gmra.mrb[0].mxu0 %v175
    %v470 = vpop.f32.mrb[0].mxu0
    %v471 = vadd.f32 %v386, %v470
    %v472 = vpop.f32.mrb[0].mxu0
    %473 = vmatprep.mubr.f32.mxu0 0.0
    %474 = vmatmul.mubr.f32.gmra.mrb[0].mxu0 %v176
    %v475 = vpop.f32.mrb[0].mxu0
    %v476 = vadd.f32 %v391, %v475
    %v477 = vpop.f32.mrb[0].mxu0
    %478 = vmatprep.mubr.f32.mxu0 0.0
    %479 = vmatmul.mubr.f32.gmra.mrb[0].mxu0 %v177
    %v480 = vpop.f32.mrb[0].mxu0
    %v481 = vadd.f32 %v396, %v480
    %v482 = vpop.f32.mrb[0].mxu0
    %483 = vdwg.mxu0
    %s484 = scalar_lea.vmem [#allocation5], 256
    %v485 = vld [vmem:[%s484] sm:$0xff]
    %v486 = vld [vmem:[%s484 + $0x8] sm:$0xff]
    %v487 = vld [vmem:[%s484 + $0x10] sm:$0xff]
    %v488 = vld [vmem:[%s484 + $0x18] sm:$0xff]
    %v489 = vld [vmem:[%s484 + $0x20] sm:$0xff]
    %v490 = vld [vmem:[%s484 + $0x28] sm:$0xff]
    %v491 = vld [vmem:[%s484 + $0x30] sm:$0xff]
    %v492 = vld [vmem:[%s484 + $0x38] sm:$0xff]
    %v493 = vld [vmem:[%s484 + $0x40] sm:$0xff]
    %v494 = vld [vmem:[%s484 + $0x48] sm:$0xff]
    %v495 = vld [vmem:[%s484 + $0x50] sm:$0xff]
    %v496 = vld [vmem:[%s484 + $0x58] sm:$0xff]
    %v497 = vld [vmem:[%s484 + $0x60] sm:$0xff]
    %v498 = vld [vmem:[%s484 + $0x68] sm:$0xff]
    %v499 = vld [vmem:[%s484 + $0x70] sm:$0xff]
    %v500 = vld [vmem:[%s484 + $0x78] sm:$0xff]
    %501 = vmatprep.subr.mxu0 0.0
    %502 = vmatpush1.msra.mxu0 %v485
    %503 = vmatprep.subr.mxu0 0.0
    %504 = vmatpush1.msra.mxu0 %v486
    %505 = vmatprep.subr.mxu0 0.0
    %506 = vmatpush1.msra.mxu0 %v487
    %507 = vmatprep.subr.mxu0 0.0
    %508 = vmatpush1.msra.mxu0 %v488
    %509 = vmatprep.subr.mxu0 0.0
    %510 = vmatpush1.msra.mxu0 %v489
    %511 = vmatprep.subr.mxu0 0.0
    %512 = vmatpush1.msra.mxu0 %v490
    %513 = vmatprep.subr.mxu0 0.0
    %514 = vmatpush1.msra.mxu0 %v491
    %515 = vmatprep.subr.mxu0 0.0
    %516 = vmatpush1.msra.mxu0 %v492
    %517 = vmatprep.subr.mxu0 0.0
    %518 = vmatpush1.msra.mxu0 %v493
    %519 = vmatprep.subr.mxu0 0.0
    %520 = vmatpush1.msra.mxu0 %v494
    %521 = vmatprep.subr.mxu0 0.0
    %522 = vmatpush1.msra.mxu0 %v495
    %523 = vmatprep.subr.mxu0 0.0
    %524 = vmatpush1.msra.mxu0 %v496
    %525 = vmatprep.subr.mxu0 0.0
    %526 = vmatpush1.msra.mxu0 %v497
    %527 = vmatprep.subr.mxu0 0.0
    %528 = vmatpush1.msra.mxu0 %v498
    %529 = vmatprep.subr.mxu0 0.0
    %530 = vmatpush1.msra.mxu0 %v499
    %531 = vmatprep.subr.mxu0 0.0
    %532 = vmatpush1.msra.mxu0 %v500
    %533 = vmatprep.subr.mxu0 0.0
    %534 = vmatpush1.msra.mxu0 0.0
    %535 = vmatprep.subr.mxu0 0.0
    %536 = vmatpush1.msra.mxu0 0.0
    %537 = vmatprep.subr.mxu0 0.0
    %538 = vmatpush1.msra.mxu0 0.0
    %539 = vmatprep.subr.mxu0 0.0
    %540 = vmatpush1.msra.mxu0 0.0
    %541 = vmatprep.subr.mxu0 0.0
    %542 = vmatpush1.msra.mxu0 0.0
    %543 = vmatprep.subr.mxu0 0.0
    %544 = vmatpush1.msra.mxu0 0.0
    %545 = vmatprep.subr.mxu0 0.0
    %546 = vmatpush1.msra.mxu0 0.0
    %547 = vmatprep.subr.mxu0 0.0
    %548 = vmatpush1.msra.mxu0 0.0
    %549 = vmatprep.subr.mxu0 0.0
    %550 = vmatpush1.msra.mxu0 0.0
    %551 = vmatprep.subr.mxu0 0.0
    %552 = vmatpush1.msra.mxu0 0.0
    %553 = vmatprep.subr.mxu0 0.0
    %554 = vmatpush1.msra.mxu0 0.0
    %555 = vmatprep.subr.mxu0 0.0
    %556 = vmatpush1.msra.mxu0 0.0
    %557 = vmatprep.subr.mxu0 0.0
    %558 = vmatpush1.msra.mxu0 0.0
    %559 = vmatprep.subr.mxu0 0.0
    %560 = vmatpush1.msra.mxu0 0.0
    %561 = vmatprep.subr.mxu0 0.0
    %562 = vmatpush1.msra.mxu0 0.0
    %563 = vmatprep.subr.mxu0 0.0
    %564 = vmatpush1.msra.mxu0 0.0
    %565 = vmatprep.mubr.f32.mxu0 0.0
    %566 = vmatmul.mubr.f32.gmra.mrb[0].mxu0 %v277
    %v567 = vpop.f32.mrb[0].mxu0
    %v568 = vadd.f32 0.0, %v567
    %v569 = vpop.f32.mrb[0].mxu0
    %570 = vmatprep.mubr.f32.mxu0 0.0
    %571 = vmatmul.mubr.f32.gmra.mrb[0].mxu0 %v278
    %v572 = vpop.f32.mrb[0].mxu0
    %v573 = vadd.f32 0.0, %v572
    %v574 = vpop.f32.mrb[0].mxu0
    %575 = vmatprep.mubr.f32.mxu0 0.0
    %576 = vmatmul.mubr.f32.gmra.mrb[0].mxu0 %v279
    %v577 = vpop.f32.mrb[0].mxu0
    %v578 = vadd.f32 0.0, %v577
    %v579 = vpop.f32.mrb[0].mxu0
    %580 = vmatprep.mubr.f32.mxu0 0.0
    %581 = vmatmul.mubr.f32.gmra.mrb[0].mxu0 %v280
    %v582 = vpop.f32.mrb[0].mxu0
    %v583 = vadd.f32 0.0, %v582
    %v584 = vpop.f32.mrb[0].mxu0
    %585 = vdwg.mxu0
    %v586 = vadd.f32 %v466, %v568
    %v587 = vadd.f32 %v471, %v573
    %v588 = vadd.f32 %v476, %v578
    %v589 = vadd.f32 %v481, %v583
    %v590 = vld [vmem:[#allocation7] sm:$0x1]
    %v592 = vlaneseq
    %v593 = vshrl.u32 %v592, 7
    %v594 = vsub.s32 0, %v593
    %v595 = vrot.slane %v590, %v594
    %v597 = vadd.f32 %v586, %v595
    %v598 = vadd.f32 %v587, %v595
    %v599 = vadd.f32 %v588, %v595
    %v600 = vadd.f32 %v589, %v595
    %v601 = vld [vmem:[#allocation8] sm:$0x1]
    %v602 = vld [vmem:[#allocation10] sm:$0x1]
    %v603 = vadd.f32 %v597, %v598
    %v604 = vadd.f32 %v603, %v599
    %v605 = vadd.f32 %v604, %v600
    %v606 = vrot.slane %v605, 4
    %v607 = vadd.f32 %v605, %v606
    %v608 = vrot.slane %v607, 2
    %v609 = vadd.f32 %v607, %v608
    %v610 = vrot.slane %v609, 1
    %v611 = vadd.f32 %v609, %v610
    %v612 = vmul.f32 %v597, %v597
    %v613 = vmul.f32 %v598, %v598
    %v614 = vmul.f32 %v599, %v599
    %v615 = vmul.f32 %v600, %v600
    %v616 = vadd.f32 %v612, %v613
    %v617 = vadd.f32 %v616, %v614
    %v618 = vadd.f32 %v617, %v615
    %v619 = vrot.slane %v618, 4
    %v620 = vadd.f32 %v618, %v619
    %v621 = vrot.slane %v620, 2
    %v622 = vadd.f32 %v620, %v621
    %v623 = vrot.slane %v622, 1
    %v624 = vadd.f32 %v622, %v623
    %v625 = vmul.f32 %v611, 0.03125
    %v626 = vmul.f32 %v624, 0.03125
    %v627 = vmul.f32 %v625, %v625
    %v628 = vsub.f32 %v626, %v627
    %v629 = vmax.f32 %v628, 0.0
    %v630 = vadd.f32 %v629, 1e-05
    %v631 = vrsqrt.pop %v630
    %v632 = vmul.f32 %v601, %v631
    %v633 = vmul.f32 %v625, %v632
    %v634 = vsub.f32 %v602, %v633
    %v636 = vlaneseq
    %v637 = vshrl.u32 %v636, 7
    %v638 = vsub.s32 0, %v637
    %v639 = vrot.slane %v632, %v638
    %v641 = vmul.f32 %v597, %v639
    %v642 = vmul.f32 %v598, %v639
    %v643 = vmul.f32 %v599, %v639
    %v644 = vmul.f32 %v600, %v639
    %v646 = vlaneseq
    %v647 = vshrl.u32 %v646, 7
    %v648 = vsub.s32 0, %v647
    %v649 = vrot.slane %v634, %v648
    %v651 = vadd.f32 %v641, %v649
    %v652 = vadd.f32 %v642, %v649
    %v653 = vadd.f32 %v643, %v649
    %v654 = vadd.f32 %v644, %v649
    %v655 = vmax.f32 %v651, 0.0
    %v656 = vmax.f32 %v652, 0.0
    %v657 = vmax.f32 %v653, 0.0
    %v658 = vmax.f32 %v654, 0.0
    %v659 = vrot.slane %v655, 7
    %v660 = vrot.slane %v656, 7
    %v661 = vrot.slane %v657, 7
    %v662 = vrot.slane %v658, 7
    %v663 = vsel %vm243, %v661, %v662
    %v664 = vsel %vm243, %v660, %v661
    %v665 = vsel %vm243, %v659, %v660
    %v666 = vsel %vm243, %v662, %v659
    %v667 = vsel %vm252, 0.0, %v666
    %v668 = vsel %vm253, 0.0, %v665
    %v669 = vsel %vm254, 0.0, %v664
    %v670 = vsel %vm255, 0.0, %v663
    %v671 = vrot.slane %v655, 1
    %v672 = vrot.slane %v656, 1
    %v673 = vrot.slane %v657, 1
    %v674 = vrot.slane %v658, 1
    %v675 = vsel %vm264, %v673, %v674
    %v676 = vsel %vm264, %v672, %v673
    %v677 = vsel %vm264, %v671, %v672
    %v678 = vsel %vm264, %v674, %v671
    %v679 = vsel %vm273, 0.0, %v677
    %v680 = vsel %vm274, 0.0, %v676
    %v681 = vsel %vm275, 0.0, %v675
    %v682 = vsel %vm276, 0.0, %v678
    %s683 = scalar_lea.vmem [#allocation11], 128
    %v684 = vld [vmem:[%s683] sm:$0xff]
    %v685 = vld [vmem:[%s683 + $0x8] sm:$0xff]
    %v686 = vld [vmem:[%s683 + $0x10] sm:$0xff]
    %v687 = vld [vmem:[%s683 + $0x18] sm:$0xff]
    %v688 = vld [vmem:[%s683 + $0x20] sm:$0xff]
    %v689 = vld [vmem:[%s683 + $0x28] sm:$0xff]
    %v690 = vld [vmem:[%s683 + $0x30] sm:$0xff]
    %v691 = vld [vmem:[%s683 + $0x38] sm:$0xff]
    %v692 = vld [vmem:[%s683 + $0x40] sm:$0xff]
    %v693 = vld [vmem:[%s683 + $0x48] sm:$0xff]
    %v694 = vld [vmem:[%s683 + $0x50] sm:$0xff]
    %v695 = vld [vmem:[%s683 + $0x58] sm:$0xff]
    %v696 = vld [vmem:[%s683 + $0x60] sm:$0xff]
    %v697 = vld [vmem:[%s683 + $0x68] sm:$0xff]
    %v698 = vld [vmem:[%s683 + $0x70] sm:$0xff]
    %v699 = vld [vmem:[%s683 + $0x78] sm:$0xff]
    %v700 = vld [vmem:[#allocation11] sm:$0xff]
    %v701 = vld [vmem:[#allocation11 + $0x8] sm:$0xff]
    %v702 = vld [vmem:[#allocation11 + $0x10] sm:$0xff]
    %v703 = vld [vmem:[#allocation11 + $0x18] sm:$0xff]
    %v704 = vld [vmem:[#allocation11 + $0x20] sm:$0xff]
    %v705 = vld [vmem:[#allocation11 + $0x28] sm:$0xff]
    %v706 = vld [vmem:[#allocation11 + $0x30] sm:$0xff]
    %v707 = vld [vmem:[#allocation11 + $0x38] sm:$0xff]
    %v708 = vld [vmem:[#allocation11 + $0x40] sm:$0xff]
    %v709 = vld [vmem:[#allocation11 + $0x48] sm:$0xff]
    %v710 = vld [vmem:[#allocation11 + $0x50] sm:$0xff]
    %v711 = vld [vmem:[#allocation11 + $0x58] sm:$0xff]
    %v712 = vld [vmem:[#allocation11 + $0x60] sm:$0xff]
    %v713 = vld [vmem:[#allocation11 + $0x68] sm:$0xff]
    %v714 = vld [vmem:[#allocation11 + $0x70] sm:$0xff]
    %v715 = vld [vmem:[#allocation11 + $0x78] sm:$0xff]
    %716 = vmatprep.subr.mxu0 0.0
    %717 = vmatpush1.msra.mxu0 %v700
    %718 = vmatprep.subr.mxu0 0.0
    %719 = vmatpush1.msra.mxu0 %v701
    %720 = vmatprep.subr.mxu0 0.0
    %721 = vmatpush1.msra.mxu0 %v702
    %722 = vmatprep.subr.mxu0 0.0
    %723 = vmatpush1.msra.mxu0 %v703
    %724 = vmatprep.subr.mxu0 0.0
    %725 = vmatpush1.msra.mxu0 %v704
    %726 = vmatprep.subr.mxu0 0.0
    %727 = vmatpush1.msra.mxu0 %v705
    %728 = vmatprep.subr.mxu0 0.0
    %729 = vmatpush1.msra.mxu0 %v706
    %730 = vmatprep.subr.mxu0 0.0
    %731 = vmatpush1.msra.mxu0 %v707
    %732 = vmatprep.subr.mxu0 0.0
    %733 = vmatpush1.msra.mxu0 %v708
    %734 = vmatprep.subr.mxu0 0.0
    %735 = vmatpush1.msra.mxu0 %v709
    %736 = vmatprep.subr.mxu0 0.0
    %737 = vmatpush1.msra.mxu0 %v710
    %738 = vmatprep.subr.mxu0 0.0
    %739 = vmatpush1.msra.mxu0 %v711
    %740 = vmatprep.subr.mxu0 0.0
    %741 = vmatpush1.msra.mxu0 %v712
    %742 = vmatprep.subr.mxu0 0.0
    %743 = vmatpush1.msra.mxu0 %v713
    %744 = vmatprep.subr.mxu0 0.0
    %745 = vmatpush1.msra.mxu0 %v714
    %746 = vmatprep.subr.mxu0 0.0
    %747 = vmatpush1.msra.mxu0 %v715
    %748 = vmatprep.subr.mxu0 0.0
    %749 = vmatpush1.msra.mxu0 0.0
    %750 = vmatprep.subr.mxu0 0.0
    %751 = vmatpush1.msra.mxu0 0.0
    %752 = vmatprep.subr.mxu0 0.0
    %753 = vmatpush1.msra.mxu0 0.0
    %754 = vmatprep.subr.mxu0 0.0
    %755 = vmatpush1.msra.mxu0 0.0
    %756 = vmatprep.subr.mxu0 0.0
    %757 = vmatpush1.msra.mxu0 0.0
    %758 = vmatprep.subr.mxu0 0.0
    %759 = vmatpush1.msra.mxu0 0.0
    %760 = vmatprep.subr.mxu0 0.0
    %761 = vmatpush1.msra.mxu0 0.0
    %762 = vmatprep.subr.mxu0 0.0
    %763 = vmatpush1.msra.mxu0 0.0
    %764 = vmatprep.subr.mxu0 0.0
    %765 = vmatpush1.msra.mxu0 0.0
    %766 = vmatprep.subr.mxu0 0.0
    %767 = vmatpush1.msra.mxu0 0.0
    %768 = vmatprep.subr.mxu0 0.0
    %769 = vmatpush1.msra.mxu0 0.0
    %770 = vmatprep.subr.mxu0 0.0
    %771 = vmatpush1.msra.mxu0 0.0
    %772 = vmatprep.subr.mxu0 0.0
    %773 = vmatpush1.msra.mxu0 0.0
    %774 = vmatprep.subr.mxu0 0.0
    %775 = vmatpush1.msra.mxu0 0.0
    %776 = vmatprep.subr.mxu0 0.0
    %777 = vmatpush1.msra.mxu0 0.0
    %778 = vmatprep.subr.mxu0 0.0
    %779 = vmatpush1.msra.mxu0 0.0
    %780 = vmatprep.mubr.f32.mxu0 0.0
    %781 = vmatmul.mubr.f32.gmra.mrb[0].mxu0 %v667
    %v782 = vpop.f32.mrb[0].mxu0
    %v783 = vadd.f32 0.0, %v782
    %v784 = vpop.f32.mrb[0].mxu0
    %785 = vmatprep.mubr.f32.mxu0 0.0
    %786 = vmatmul.mubr.f32.gmra.mrb[0].mxu0 %v668
    %v787 = vpop.f32.mrb[0].mxu0
    %v788 = vadd.f32 0.0, %v787
    %v789 = vpop.f32.mrb[0].mxu0
    %790 = vmatprep.mubr.f32.mxu0 0.0
    %791 = vmatmul.mubr.f32.gmra.mrb[0].mxu0 %v669
    %v792 = vpop.f32.mrb[0].mxu0
    %v793 = vadd.f32 0.0, %v792
    %v794 = vpop.f32.mrb[0].mxu0
    %795 = vmatprep.mubr.f32.mxu0 0.0
    %796 = vmatmul.mubr.f32.gmra.mrb[0].mxu0 %v670
    %v797 = vpop.f32.mrb[0].mxu0
    %v798 = vadd.f32 0.0, %v797
    %v799 = vpop.f32.mrb[0].mxu0
    %800 = vdwg.mxu0
    %801 = vmatprep.subr.mxu0 0.0
    %802 = vmatpush1.msra.mxu0 %v684
    %803 = vmatprep.subr.mxu0 0.0
    %804 = vmatpush1.msra.mxu0 %v685
    %805 = vmatprep.subr.mxu0 0.0
    %806 = vmatpush1.msra.mxu0 %v686
    %807 = vmatprep.subr.mxu0 0.0
    %808 = vmatpush1.msra.mxu0 %v687
    %809 = vmatprep.subr.mxu0 0.0
    %810 = vmatpush1.msra.mxu0 %v688
    %811 = vmatprep.subr.mxu0 0.0
    %812 = vmatpush1.msra.mxu0 %v689
    %813 = vmatprep.subr.mxu0 0.0
    %814 = vmatpush1.msra.mxu0 %v690
    %815 = vmatprep.subr.mxu0 0.0
    %816 = vmatpush1.msra.mxu0 %v691
    %817 = vmatprep.subr.mxu0 0.0
    %818 = vmatpush1.msra.mxu0 %v692
    %819 = vmatprep.subr.mxu0 0.0
    %820 = vmatpush1.msra.mxu0 %v693
    %821 = vmatprep.subr.mxu0 0.0
    %822 = vmatpush1.msra.mxu0 %v694
    %823 = vmatprep.subr.mxu0 0.0
    %824 = vmatpush1.msra.mxu0 %v695
    %825 = vmatprep.subr.mxu0 0.0
    %826 = vmatpush1.msra.mxu0 %v696
    %827 = vmatprep.subr.mxu0 0.0
    %828 = vmatpush1.msra.mxu0 %v697
    %829 = vmatprep.subr.mxu0 0.0
    %830 = vmatpush1.msra.mxu0 %v698
    %831 = vmatprep.subr.mxu0 0.0
    %832 = vmatpush1.msra.mxu0 %v699
    %833 = vmatprep.subr.mxu0 0.0
    %834 = vmatpush1.msra.mxu0 0.0
    %835 = vmatprep.subr.mxu0 0.0
    %836 = vmatpush1.msra.mxu0 0.0
    %837 = vmatprep.subr.mxu0 0.0
    %838 = vmatpush1.msra.mxu0 0.0
    %839 = vmatprep.subr.mxu0 0.0
    %840 = vmatpush1.msra.mxu0 0.0
    %841 = vmatprep.subr.mxu0 0.0
    %842 = vmatpush1.msra.mxu0 0.0
    %843 = vmatprep.subr.mxu0 0.0
    %844 = vmatpush1.msra.mxu0 0.0
    %845 = vmatprep.subr.mxu0 0.0
    %846 = vmatpush1.msra.mxu0 0.0
    %847 = vmatprep.subr.mxu0 0.0
    %848 = vmatpush1.msra.mxu0 0.0
    %849 = vmatprep.subr.mxu0 0.0
    %850 = vmatpush1.msra.mxu0 0.0
    %851 = vmatprep.subr.mxu0 0.0
    %852 = vmatpush1.msra.mxu0 0.0
    %853 = vmatprep.subr.mxu0 0.0
    %854 = vmatpush1.msra.mxu0 0.0
    %855 = vmatprep.subr.mxu0 0.0
    %856 = vmatpush1.msra.mxu0 0.0
    %857 = vmatprep.subr.mxu0 0.0
    %858 = vmatpush1.msra.mxu0 0.0
    %859 = vmatprep.subr.mxu0 0.0
    %860 = vmatpush1.msra.mxu0 0.0
    %861 = vmatprep.subr.mxu0 0.0
    %862 = vmatpush1.msra.mxu0 0.0
    %863 = vmatprep.subr.mxu0 0.0
    %864 = vmatpush1.msra.mxu0 0.0
    %865 = vmatprep.mubr.f32.mxu0 0.0
    %866 = vmatmul.mubr.f32.gmra.mrb[0].mxu0 %v655
    %v867 = vpop.f32.mrb[0].mxu0
    %v868 = vadd.f32 %v783, %v867
    %v869 = vpop.f32.mrb[0].mxu0
    %870 = vmatprep.mubr.f32.mxu0 0.0
    %871 = vmatmul.mubr.f32.gmra.mrb[0].mxu0 %v656
    %v872 = vpop.f32.mrb[0].mxu0
    %v873 = vadd.f32 %v788, %v872
    %v874 = vpop.f32.mrb[0].mxu0
    %875 = vmatprep.mubr.f32.mxu0 0.0
    %876 = vmatmul.mubr.f32.gmra.mrb[0].mxu0 %v657
    %v877 = vpop.f32.mrb[0].mxu0
    %v878 = vadd.f32 %v793, %v877
    %v879 = vpop.f32.mrb[0].mxu0
    %880 = vmatprep.mubr.f32.mxu0 0.0
    %881 = vmatmul.mubr.f32.gmra.mrb[0].mxu0 %v658
    %v882 = vpop.f32.mrb[0].mxu0
    %v883 = vadd.f32 %v798, %v882
    %v884 = vpop.f32.mrb[0].mxu0
    %885 = vdwg.mxu0
    %s886 = scalar_lea.vmem [#allocation11], 256
    %v887 = vld [vmem:[%s886] sm:$0xff]
    %v888 = vld [vmem:[%s886 + $0x8] sm:$0xff]
    %v889 = vld [vmem:[%s886 + $0x10] sm:$0xff]
    %v890 = vld [vmem:[%s886 + $0x18] sm:$0xff]
    %v891 = vld [vmem:[%s886 + $0x20] sm:$0xff]
    %v892 = vld [vmem:[%s886 + $0x28] sm:$0xff]
    %v893 = vld [vmem:[%s886 + $0x30] sm:$0xff]
    %v894 = vld [vmem:[%s886 + $0x38] sm:$0xff]
    %v895 = vld [vmem:[%s886 + $0x40] sm:$0xff]
    %v896 = vld [vmem:[%s886 + $0x48] sm:$0xff]
    %v897 = vld [vmem:[%s886 + $0x50] sm:$0xff]
    %v898 = vld [vmem:[%s886 + $0x58] sm:$0xff]
    %v899 = vld [vmem:[%s886 + $0x60] sm:$0xff]
    %v900 = vld [vmem:[%s886 + $0x68] sm:$0xff]
    %v901 = vld [vmem:[%s886 + $0x70] sm:$0xff]
    %v902 = vld [vmem:[%s886 + $0x78] sm:$0xff]
    %903 = vmatprep.subr.mxu0 0.0
    %904 = vmatpush1.msra.mxu0 %v887
    %905 = vmatprep.subr.mxu0 0.0
    %906 = vmatpush1.msra.mxu0 %v888
    %907 = vmatprep.subr.mxu0 0.0
    %908 = vmatpush1.msra.mxu0 %v889
    %909 = vmatprep.subr.mxu0 0.0
    %910 = vmatpush1.msra.mxu0 %v890
    %911 = vmatprep.subr.mxu0 0.0
    %912 = vmatpush1.msra.mxu0 %v891
    %913 = vmatprep.subr.mxu0 0.0
    %914 = vmatpush1.msra.mxu0 %v892
    %915 = vmatprep.subr.mxu0 0.0
    %916 = vmatpush1.msra.mxu0 %v893
    %917 = vmatprep.subr.mxu0 0.0
    %918 = vmatpush1.msra.mxu0 %v894
    %919 = vmatprep.subr.mxu0 0.0
    %920 = vmatpush1.msra.mxu0 %v895
    %921 = vmatprep.subr.mxu0 0.0
    %922 = vmatpush1.msra.mxu0 %v896
    %923 = vmatprep.subr.mxu0 0.0
    %924 = vmatpush1.msra.mxu0 %v897
    %925 = vmatprep.subr.mxu0 0.0
    %926 = vmatpush1.msra.mxu0 %v898
    %927 = vmatprep.subr.mxu0 0.0
    %928 = vmatpush1.msra.mxu0 %v899
    %929 = vmatprep.subr.mxu0 0.0
    %930 = vmatpush1.msra.mxu0 %v900
    %931 = vmatprep.subr.mxu0 0.0
    %932 = vmatpush1.msra.mxu0 %v901
    %933 = vmatprep.subr.mxu0 0.0
    %934 = vmatpush1.msra.mxu0 %v902
    %935 = vmatprep.subr.mxu0 0.0
    %936 = vmatpush1.msra.mxu0 0.0
    %937 = vmatprep.subr.mxu0 0.0
    %938 = vmatpush1.msra.mxu0 0.0
    %939 = vmatprep.subr.mxu0 0.0
    %940 = vmatpush1.msra.mxu0 0.0
    %941 = vmatprep.subr.mxu0 0.0
    %942 = vmatpush1.msra.mxu0 0.0
    %943 = vmatprep.subr.mxu0 0.0
    %944 = vmatpush1.msra.mxu0 0.0
    %945 = vmatprep.subr.mxu0 0.0
    %946 = vmatpush1.msra.mxu0 0.0
    %947 = vmatprep.subr.mxu0 0.0
    %948 = vmatpush1.msra.mxu0 0.0
    %949 = vmatprep.subr.mxu0 0.0
    %950 = vmatpush1.msra.mxu0 0.0
    %951 = vmatprep.subr.mxu0 0.0
    %952 = vmatpush1.msra.mxu0 0.0
    %953 = vmatprep.subr.mxu0 0.0
    %954 = vmatpush1.msra.mxu0 0.0
    %955 = vmatprep.subr.mxu0 0.0
    %956 = vmatpush1.msra.mxu0 0.0
    %957 = vmatprep.subr.mxu0 0.0
    %958 = vmatpush1.msra.mxu0 0.0
    %959 = vmatprep.subr.mxu0 0.0
    %960 = vmatpush1.msra.mxu0 0.0
    %961 = vmatprep.subr.mxu0 0.0
    %962 = vmatpush1.msra.mxu0 0.0
    %963 = vmatprep.subr.mxu0 0.0
    %964 = vmatpush1.msra.mxu0 0.0
    %965 = vmatprep.subr.mxu0 0.0
    %966 = vmatpush1.msra.mxu0 0.0
    %967 = vmatprep.mubr.f32.mxu0 0.0
    %968 = vmatmul.mubr.f32.gmra.mrb[0].mxu0 %v679
    %v969 = vpop.f32.mrb[0].mxu0
    %v970 = vadd.f32 0.0, %v969
    %v971 = vpop.f32.mrb[0].mxu0
    %972 = vmatprep.mubr.f32.mxu0 0.0
    %973 = vmatmul.mubr.f32.gmra.mrb[0].mxu0 %v680
    %v974 = vpop.f32.mrb[0].mxu0
    %v975 = vadd.f32 0.0, %v974
    %v976 = vpop.f32.mrb[0].mxu0
    %977 = vmatprep.mubr.f32.mxu0 0.0
    %978 = vmatmul.mubr.f32.gmra.mrb[0].mxu0 %v681
    %v979 = vpop.f32.mrb[0].mxu0
    %v980 = vadd.f32 0.0, %v979
    %v981 = vpop.f32.mrb[0].mxu0
    %982 = vmatprep.mubr.f32.mxu0 0.0
    %983 = vmatmul.mubr.f32.gmra.mrb[0].mxu0 %v682
    %v984 = vpop.f32.mrb[0].mxu0
    %v985 = vadd.f32 0.0, %v984
    %v986 = vpop.f32.mrb[0].mxu0
    %987 = vdwg.mxu0
    %v988 = vadd.f32 %v868, %v970
    %v989 = vadd.f32 %v873, %v975
    %v990 = vadd.f32 %v878, %v980
    %v991 = vadd.f32 %v883, %v985
    %v992 = vld [vmem:[#allocation13] sm:$0x1]
    %v993 = vld [vmem:[#allocation14] sm:$0x1]
    %v994 = vadd.f32 %v988, %v989
    %v995 = vadd.f32 %v994, %v990
    %v996 = vadd.f32 %v995, %v991
    %v997 = vrot.slane %v996, 4
    %v998 = vadd.f32 %v996, %v997
    %v999 = vrot.slane %v998, 2
    %v1000 = vadd.f32 %v998, %v999
    %v1001 = vrot.slane %v1000, 1
    %v1002 = vadd.f32 %v1000, %v1001
    %v1003 = vmul.f32 %v988, %v988
    %v1004 = vmul.f32 %v989, %v989
    %v1005 = vmul.f32 %v990, %v990
    %v1006 = vmul.f32 %v991, %v991
    %v1007 = vadd.f32 %v1003, %v1004
    %v1008 = vadd.f32 %v1007, %v1005
    %v1009 = vadd.f32 %v1008, %v1006
    %v1010 = vrot.slane %v1009, 4
    %v1011 = vadd.f32 %v1009, %v1010
    %v1012 = vrot.slane %v1011, 2
    %v1013 = vadd.f32 %v1011, %v1012
    %v1014 = vrot.slane %v1013, 1
    %v1015 = vadd.f32 %v1013, %v1014
    %v1016 = vmul.f32 %v1002, 0.03125
    %v1017 = vmul.f32 %v1015, 0.03125
    %v1018 = vmul.f32 %v1016, %v1016
    %v1019 = vsub.f32 %v1017, %v1018
    %v1020 = vmax.f32 %v1019, 0.0
    %v1021 = vadd.f32 %v1020, 1e-05
    %v1022 = vrsqrt.pop %v1021
    %v1023 = vmul.f32 %v992, %v1022
    %v1024 = vmul.f32 %v1016, %v1023
    %v1025 = vsub.f32 %v993, %v1024
    %v1027 = vlaneseq
    %v1028 = vshrl.u32 %v1027, 7
    %v1029 = vsub.s32 0, %v1028
    %v1030 = vrot.slane %v1023, %v1029
    %v1032 = vmul.f32 %v988, %v1030
    %v1033 = vmul.f32 %v989, %v1030
    %v1034 = vmul.f32 %v990, %v1030
    %v1035 = vmul.f32 %v991, %v1030
    %v1037 = vlaneseq
    %v1038 = vshrl.u32 %v1037, 7
    %v1039 = vsub.s32 0, %v1038
    %v1040 = vrot.slane %v1025, %v1039
    %v1042 = vadd.f32 %v1032, %v1040
    %v1043 = vadd.f32 %v1033, %v1040
    %v1044 = vadd.f32 %v1034, %v1040
    %v1045 = vadd.f32 %v1035, %v1040
    %v1046 = vld [vmem:[#allocation16] sm:$0xff]
    %v1047 = vld [vmem:[#allocation16 + $0x8] sm:$0xff]
    %v1048 = vld [vmem:[#allocation16 + $0x10] sm:$0xff]
    %v1049 = vld [vmem:[#allocation16 + $0x18] sm:$0xff]
    %v1050 = vld [vmem:[#allocation16 + $0x20] sm:$0xff]
    %v1051 = vld [vmem:[#allocation16 + $0x28] sm:$0xff]
    %v1052 = vld [vmem:[#allocation16 + $0x30] sm:$0xff]
    %v1053 = vld [vmem:[#allocation16 + $0x38] sm:$0xff]
    %v1054 = vld [vmem:[#allocation16 + $0x40] sm:$0xff]
    %v1055 = vld [vmem:[#allocation16 + $0x48] sm:$0xff]
    %v1056 = vld [vmem:[#allocation16 + $0x50] sm:$0xff]
    %v1057 = vld [vmem:[#allocation16 + $0x58] sm:$0xff]
    %v1058 = vld [vmem:[#allocation16 + $0x60] sm:$0xff]
    %v1059 = vld [vmem:[#allocation16 + $0x68] sm:$0xff]
    %v1060 = vld [vmem:[#allocation16 + $0x70] sm:$0xff]
    %v1061 = vld [vmem:[#allocation16 + $0x78] sm:$0xff]
    %1062 = vmatprep.subr.mxu0 0.0
    %1063 = vmatpush1.msra.mxu0 %v1046
    %1064 = vmatprep.subr.mxu0 0.0
    %1065 = vmatpush1.msra.mxu0 %v1047
    %1066 = vmatprep.subr.mxu0 0.0
    %1067 = vmatpush1.msra.mxu0 %v1048
    %1068 = vmatprep.subr.mxu0 0.0
    %1069 = vmatpush1.msra.mxu0 %v1049
    %1070 = vmatprep.subr.mxu0 0.0
    %1071 = vmatpush1.msra.mxu0 %v1050
    %1072 = vmatprep.subr.mxu0 0.0
    %1073 = vmatpush1.msra.mxu0 %v1051
    %1074 = vmatprep.subr.mxu0 0.0
    %1075 = vmatpush1.msra.mxu0 %v1052
    %1076 = vmatprep.subr.mxu0 0.0
    %1077 = vmatpush1.msra.mxu0 %v1053
    %1078 = vmatprep.subr.mxu0 0.0
    %1079 = vmatpush1.msra.mxu0 %v1054
    %1080 = vmatprep.subr.mxu0 0.0
    %1081 = vmatpush1.msra.mxu0 %v1055
    %1082 = vmatprep.subr.mxu0 0.0
    %1083 = vmatpush1.msra.mxu0 %v1056
    %1084 = vmatprep.subr.mxu0 0.0
    %1085 = vmatpush1.msra.mxu0 %v1057
    %1086 = vmatprep.subr.mxu0 0.0
    %1087 = vmatpush1.msra.mxu0 %v1058
    %1088 = vmatprep.subr.mxu0 0.0
    %1089 = vmatpush1.msra.mxu0 %v1059
    %1090 = vmatprep.subr.mxu0 0.0
    %1091 = vmatpush1.msra.mxu0 %v1060
    %1092 = vmatprep.subr.mxu0 0.0
    %1093 = vmatpush1.msra.mxu0 %v1061
    %1094 = vmatprep.subr.mxu0 0.0
    %1095 = vmatpush1.msra.mxu0 0.0
    %1096 = vmatprep.subr.mxu0 0.0
    %1097 = vmatpush1.msra.mxu0 0.0
    %1098 = vmatprep.subr.mxu0 0.0
    %1099 = vmatpush1.msra.mxu0 0.0
    %1100 = vmatprep.subr.mxu0 0.0
    %1101 = vmatpush1.msra.mxu0 0.0
    %1102 = vmatprep.subr.mxu0 0.0
    %1103 = vmatpush1.msra.mxu0 0.0
    %1104 = vmatprep.subr.mxu0 0.0
    %1105 = vmatpush1.msra.mxu0 0.0
    %1106 = vmatprep.subr.mxu0 0.0
    %1107 = vmatpush1.msra.mxu0 0.0
    %1108 = vmatprep.subr.mxu0 0.0
    %1109 = vmatpush1.msra.mxu0 0.0
    %1110 = vmatprep.subr.mxu0 0.0
    %1111 = vmatpush1.msra.mxu0 0.0
    %1112 = vmatprep.subr.mxu0 0.0
    %1113 = vmatpush1.msra.mxu0 0.0
    %1114 = vmatprep.subr.mxu0 0.0
    %1115 = vmatpush1.msra.mxu0 0.0
    %1116 = vmatprep.subr.mxu0 0.0
    %1117 = vmatpush1.msra.mxu0 0.0
    %1118 = vmatprep.subr.mxu0 0.0
    %1119 = vmatpush1.msra.mxu0 0.0
    %1120 = vmatprep.subr.mxu0 0.0
    %1121 = vmatpush1.msra.mxu0 0.0
    %1122 = vmatprep.subr.mxu0 0.0
    %1123 = vmatpush1.msra.mxu0 0.0
    %1124 = vmatprep.subr.mxu0 0.0
    %1125 = vmatpush1.msra.mxu0 0.0
    %1126 = vmatprep.mubr.f32.mxu0 0.0
    %1127 = vmatmul.mubr.f32.gmra.mrb[0].mxu0 %v174
    %v1128 = vpop.f32.mrb[0].mxu0
    %v1129 = vadd.f32 0.0, %v1128
    %v1130 = vpop.f32.mrb[0].mxu0
    %1131 = vmatprep.mubr.f32.mxu0 0.0
    %1132 = vmatmul.mubr.f32.gmra.mrb[0].mxu0 %v175
    %v1133 = vpop.f32.mrb[0].mxu0
    %v1134 = vadd.f32 0.0, %v1133
    %v1135 = vpop.f32.mrb[0].mxu0
    %1136 = vmatprep.mubr.f32.mxu0 0.0
    %1137 = vmatmul.mubr.f32.gmra.mrb[0].mxu0 %v176
    %v1138 = vpop.f32.mrb[0].mxu0
    %v1139 = vadd.f32 0.0, %v1138
    %v1140 = vpop.f32.mrb[0].mxu0
    %1141 = vmatprep.mubr.f32.mxu0 0.0
    %1142 = vmatmul.mubr.f32.gmra.mrb[0].mxu0 %v177
    %v1143 = vpop.f32.mrb[0].mxu0
    %v1144 = vadd.f32 0.0, %v1143
    %v1145 = vpop.f32.mrb[0].mxu0
    %1146 = vdwg.mxu0
    %v1147 = vld [vmem:[#allocation17] sm:$0x1]
    %v1148 = vld [vmem:[#allocation19] sm:$0x1]
    %v1149 = vadd.f32 %v1129, %v1134
    %v1150 = vadd.f32 %v1149, %v1139
    %v1151 = vadd.f32 %v1150, %v1144
    %v1152 = vrot.slane %v1151, 4
    %v1153 = vadd.f32 %v1151, %v1152
    %v1154 = vrot.slane %v1153, 2
    %v1155 = vadd.f32 %v1153, %v1154
    %v1156 = vrot.slane %v1155, 1
    %v1157 = vadd.f32 %v1155, %v1156
    %v1158 = vmul.f32 %v1129, %v1129
    %v1159 = vmul.f32 %v1134, %v1134
    %v1160 = vmul.f32 %v1139, %v1139
    %v1161 = vmul.f32 %v1144, %v1144
    %v1162 = vadd.f32 %v1158, %v1159
    %v1163 = vadd.f32 %v1162, %v1160
    %v1164 = vadd.f32 %v1163, %v1161
    %v1165 = vrot.slane %v1164, 4
    %v1166 = vadd.f32 %v1164, %v1165
    %v1167 = vrot.slane %v1166, 2
    %v1168 = vadd.f32 %v1166, %v1167
    %v1169 = vrot.slane %v1168, 1
    %v1170 = vadd.f32 %v1168, %v1169
    %v1171 = vmul.f32 %v1157, 0.03125
    %v1172 = vmul.f32 %v1170, 0.03125
    %v1173 = vmul.f32 %v1171, %v1171
    %v1174 = vsub.f32 %v1172, %v1173
    %v1175 = vmax.f32 %v1174, 0.0
    %v1176 = vadd.f32 %v1175, 1e-05
    %v1177 = vrsqrt.pop %v1176
    %v1178 = vmul.f32 %v1147, %v1177
    %v1179 = vmul.f32 %v1171, %v1178
    %v1180 = vsub.f32 %v1148, %v1179
    %v1182 = vlaneseq
    %v1183 = vshrl.u32 %v1182, 7
    %v1184 = vsub.s32 0, %v1183
    %v1185 = vrot.slane %v1178, %v1184
    %v1187 = vmul.f32 %v1129, %v1185
    %v1188 = vmul.f32 %v1134, %v1185
    %v1189 = vmul.f32 %v1139, %v1185
    %v1190 = vmul.f32 %v1144, %v1185
    %v1192 = vlaneseq
    %v1193 = vshrl.u32 %v1192, 7
    %v1194 = vsub.s32 0, %v1193
    %v1195 = vrot.slane %v1180, %v1194
    %v1197 = vadd.f32 %v1187, %v1195
    %v1198 = vadd.f32 %v1188, %v1195
    %v1199 = vadd.f32 %v1189, %v1195
    %v1200 = vadd.f32 %v1190, %v1195
    %v1201 = vadd.f32 %v1042, %v1197
    %v1202 = vadd.f32 %v1043, %v1198
    %v1203 = vadd.f32 %v1044, %v1199
    %v1204 = vadd.f32 %v1045, %v1200
    %v1205 = vmax.f32 %v1201, 0.0
    %v1206 = vmax.f32 %v1202, 0.0
    %v1207 = vmax.f32 %v1203, 0.0
    %v1208 = vmax.f32 %v1204, 0.0
    %1209 = vst [vmem:[#allocation20] sm:$0xff] %v1205
    %1210 = vst [vmem:[#allocation20 + $0x8] sm:$0xff] %v1206
    %1211 = vst [vmem:[#allocation20 + $0x10] sm:$0xff] %v1207
    %1212 = vst [vmem:[#allocation20 + $0x18] sm:$0xff] %v1208
    // Predicated region
    $region90: #{tpu_custom_call.1} parent=1 // pred_check
      _
    $region91: #{tpu_custom_call.1} parent=1 // pred_check_branch
      %1214 = sbr.rel (0) target = $region93
    $region92: #{tpu_custom_call.1} parent=1 // pred_region
      %s1216 = ssub.s32 512, 512
      %1217 = vsyncadd [#allocation4], %s1216
      %s1218 = sshll.u32 [#allocation20], 4
      %s1219 = int_to_ptr.vmem [resolvable:$true] %s1218
      %1224 = dma.vmem_to_hbm [thread:$0]  %s1219, 512, %s11, [#allocation4], 128, 128, 8
    $region93: #{tpu_custom_call.1} parent=1 // pred_fallthru
      _
    // Predicated region
    $region94: #{tpu_custom_call.1} parent=1 // pred_check
      _
    $region95: #{tpu_custom_call.1} parent=1 // pred_check_branch
      %1226 = sbr.rel (0) target = $region97
    $region96: #{tpu_custom_call.1} parent=1 // pred_region
      %1227 = dma.done [#allocation4], 512
    $region97: #{tpu_custom_call.1} parent=1 // pred_fallthru
      _
    %1228 = vsyncpa [#allocation3], 1
    %1229 = vsyncpa [#allocation6], 1
    %1230 = vsyncpa [#allocation9], 1
    %1231 = vsyncpa [#allocation12], 1
    %1232 = vsyncpa [#allocation15], 1
    %1233 = vsyncpa [#allocation18], 1
    %1234 = vsyncpa [#allocation4], 1

</llo_original>
